<compile_context>
chip_gen: v7x
topology: tpu7x:2x2x1
jax: 0.10.0
libtpu: 0.0.40
codegen_flags: <defaults>
</compile_context>

<pallas_src>
import functools

import jax
import jax.numpy as jnp
from jax.experimental import pallas as pl
from jax.experimental.pallas import tpu as pltpu


NET_OUT_DIM = {"synthetic": 32}


class Args:
    backbone = "synthetic"
    img_size = 16
    n_scales = 2
    topk = 0.1


# ----------------------------------------------------------------------------
# Fused per-scale Pallas kernel:
#   feature conv (as matmul) + bias + ReLU + 1x1 score conv + |.| top-k mean
# ----------------------------------------------------------------------------

def fused_scale_kernel(pt_ref, wf_ref, bf_ref, ws_ref, bs_ref, o_ref, *, k, use_topk):
    """Processes one image of one pyramid scale.

    pt_ref: (1, K, L) bf16   im2col patches, transposed (spatial L on the lane axis)
    wf_ref: (C, K)    bf16   feature conv weight, transposed
    bf_ref: (C, 1)    f32    feature conv bias (column)
    ws_ref: (C, 1)    f32    1x1 score conv weight (column)
    bs_ref: (1,)      f32    1x1 score conv bias (SMEM scalar)
    o_ref : (1, 1, 128) f32  per-image score, broadcast across lanes
    """
    pt = pt_ref[0]                                                        # (K, L) bf16

    # Feature extractor conv as matmul: bf16 MXU, f32 accumulation, + bias + ReLU.
    feat = jnp.dot(wf_ref[...], pt, preferred_element_type=jnp.float32)   # (C, L) f32
    feat = jnp.maximum(feat + bf_ref[...], 0.0)

    # 1x1 score conv == per-position dot over channels; stays in registers.
    scores = jnp.sum(feat * ws_ref[...], axis=0, keepdims=True) + bs_ref[0]   # (1, L)

    L = scores.shape[1]
    if not use_topk:
        res = jnp.sum(scores, axis=1, keepdims=True) * (1.0 / L)          # (1, 1)
    elif k == 1:
        res = jnp.max(jnp.abs(scores), axis=1, keepdims=True)             # top-1 == max
    else:
        # Mean of the k largest |score|: exact threshold selection via a bitwise
        # binary search on the IEEE754 bits (monotone for non-negative floats).
        # 31 data-parallel compare+count passes instead of k serial arg-max passes.
        v = jnp.abs(scores)                                               # (1, L), >= 0
        vi = pltpu.bitcast(v, jnp.int32)
        cur = jnp.zeros((1, 1), jnp.int32)
        for b in range(30, -1, -1):                                       # sign bit is 0
            cand = cur | jnp.int32(1 << b)
            cnt = jnp.sum((vi >= cand).astype(jnp.int32), axis=1, keepdims=True)
            cur = jnp.where(cnt >= k, cand, cur)
        t = pltpu.bitcast(cur, jnp.float32)                               # k-th largest |s|
        gt = v > t
        cnt_gt = jnp.sum(gt.astype(jnp.float32), axis=1, keepdims=True)
        sum_gt = jnp.sum(jnp.where(gt, v, 0.0), axis=1, keepdims=True)
        res = (sum_gt + (jnp.float32(k) - cnt_gt) * t) * (1.0 / k)

    # Lane-dense store of the scalar result (avoids a last-dim-1 masked store).
    o_ref[...] = jnp.broadcast_to(res.reshape(1, 1, 1), o_ref.shape)


def fused_scale_scores(patches_t, w_feat_t, b_feat_col, w_score_col, b_score,
                       *, k, use_topk):
    """patches_t: (B, K, L) bf16; returns (B, 1) per-image score for this scale."""
    B, K, L = patches_t.shape
    C = w_feat_t.shape[0]
    flops = B * (2 * C * K * L + 4 * C * L + 40 * L)
    bytes_accessed = (patches_t.size * patches_t.dtype.itemsize
                      + w_feat_t.size * w_feat_t.dtype.itemsize
                      + b_feat_col.size * 4 + w_score_col.size * 4 + 4
                      + B * 128 * 4)
    out = pl.pallas_call(
        functools.partial(fused_scale_kernel, k=k, use_topk=use_topk),
        out_shape=jax.ShapeDtypeStruct((B, 1, 128), jnp.float32),
        grid=(B,),
        in_specs=[
            pl.BlockSpec((1, K, L), lambda b: (b, 0, 0)),
            pl.BlockSpec((C, K), lambda b: (0, 0)),
            pl.BlockSpec((C, 1), lambda b: (0, 0)),
            pl.BlockSpec((C, 1), lambda b: (0, 0)),
            pl.BlockSpec(memory_space=pltpu.MemorySpace.SMEM),
        ],
        out_specs=pl.BlockSpec((1, 1, 128), lambda b: (b, 0, 0)),
        compiler_params=pltpu.CompilerParams(dimension_semantics=("parallel",)),
        cost_estimate=pl.CostEstimate(flops=flops, transcendentals=0,
                                      bytes_accessed=bytes_accessed),
    )(patches_t, w_feat_t, b_feat_col, w_score_col, b_score)
    return out[:, 0, :1]                                                  # (B, 1) glue


# ----------------------------------------------------------------------------
# Plain-JAX glue (layout shuffling only)
# ----------------------------------------------------------------------------

def im2col_3x3_s2_p1(x_nhwc):
    """3x3 / stride-2 / pad-1 patch extraction. Pure data rearrangement (glue)."""
    B, H, W, C = x_nhwc.shape
    xp = jnp.pad(x_nhwc, ((0, 0), (1, 1), (1, 1), (0, 0)))
    Ho = (H + 2 - 3) // 2 + 1
    Wo = (W + 2 - 3) // 2 + 1
    cols = []
    for dy in range(3):
        for dx in range(3):
            cols.append(xp[:, dy:dy + 2 * Ho:2, dx:dx + 2 * Wo:2, :])
    patches = jnp.concatenate(cols, axis=-1)                              # (B, Ho, Wo, 9C)
    return patches.reshape(B, Ho * Wo, 9 * C), Ho, Wo                     # (B, L, K)


# ----------------------------------------------------------------------------
# SemiADNet forward (Pallas) and pure-JAX reference
# ----------------------------------------------------------------------------

def semi_ad_net_forward(image_nchw, params, args):
    if args.n_scales == 0:
        raise ValueError
    # Weight layout prep (hoisted out of the scale loop; pure glue).
    w_feat_t = jnp.transpose(params["w_feat"]).astype(jnp.bfloat16)       # (C, K)
    b_feat_col = params["b_feat"].reshape(-1, 1).astype(jnp.float32)      # (C, 1)
    w_score_col = params["w_score"].astype(jnp.float32)                   # (C, 1)
    b_score = params["b_score"].astype(jnp.float32)                       # (1,)

    image_pyramid = []
    for s in range(args.n_scales):
        if s > 0:
            f = 2 ** s
            # F.interpolate(image, size=img_size // 2**s) with default 'nearest'
            # on an exact power-of-two downscale == strided slicing (glue).
            img = image_nchw[:, :, ::f, ::f]
        else:
            img = image_nchw
        x = jnp.transpose(img, (0, 2, 3, 1))                              # NCHW -> NHWC
        patches, Ho, Wo = im2col_3x3_s2_p1(x)                             # (B, L, K)
        L = Ho * Wo
        patches_t = jnp.transpose(patches, (0, 2, 1)).astype(jnp.bfloat16)  # (B, K, L)

        if args.topk > 0:
            k = max(int(L * args.topk), 1)
            sc = fused_scale_scores(patches_t, w_feat_t, b_feat_col,
                                    w_score_col, b_score, k=k, use_topk=True)
        else:
            sc = fused_scale_scores(patches_t, w_feat_t, b_feat_col,
                                    w_score_col, b_score, k=1, use_topk=False)
        image_pyramid.append(sc)                                          # (B, 1)

    scores = jnp.concatenate(image_pyramid, axis=1)                       # (B, n_scales)
    return jnp.mean(scores, axis=1, keepdims=True)                        # (B, 1)


def ref_forward(image_nchw, params, args):
    """Pure-JAX reference mirroring the kernel's bf16-matmul / f32-accum numerics."""
    if args.n_scales == 0:
        raise ValueError
    B = image_nchw.shape[0]
    wf = params["w_feat"].astype(jnp.bfloat16)
    image_pyramid = []
    for s in range(args.n_scales):
        f = 2 ** s
        img = image_nchw[:, :, ::f, ::f] if s > 0 else image_nchw
        x = jnp.transpose(img, (0, 2, 3, 1))
        patches, Ho, Wo = im2col_3x3_s2_p1(x)
        L = Ho * Wo
        p = patches.reshape(B * L, -1).astype(jnp.bfloat16)
        feat = jnp.dot(p, wf, preferred_element_type=jnp.float32)
        feat = jnp.maximum(feat + params["b_feat"][None, :], 0.0)
        scores = (feat @ params["w_score"] + params["b_score"]).reshape(B, L)
        if args.topk > 0:
            k = max(int(L * args.topk), 1)
            sc = jnp.mean(jax.lax.top_k(jnp.abs(scores), k)[0], axis=1, keepdims=True)
        else:
            sc = jnp.mean(scores, axis=1, keepdims=True)
        image_pyramid.append(sc)
    scores = jnp.concatenate(image_pyramid, axis=1)
    return jnp.mean(scores, axis=1, keepdims=True)


# ----------------------------------------------------------------------------
# Main
# ----------------------------------------------------------------------------

if __name__ == "__main__":
    args = Args()
    C_IN = 4
    C_FEAT = NET_OUT_DIM[args.backbone]

    key = jax.random.PRNGKey(0)
    k_img, k1, k2, k3, k4 = jax.random.split(key, 5)

    image = jax.random.normal(k_img, (2, C_IN, args.img_size, args.img_size),
                              jnp.float32)

    params = {
        "w_feat": jax.random.normal(k1, (9 * C_IN, C_FEAT), jnp.float32) * 0.1,
        "b_feat": jax.random.normal(k2, (C_FEAT,), jnp.float32) * 0.1,
        "w_score": jax.random.normal(k3, (C_FEAT, 1), jnp.float32) * 0.1,
        "b_score": jax.random.normal(k4, (1,), jnp.float32) * 0.1,
    }

    fwd = jax.jit(lambda img, p: semi_ad_net_forward(img, p, args))
    out = jax.block_until_ready(fwd(image, params))

    ref = jax.block_until_ready(ref_forward(image, params, args))

    assert out.shape == (image.shape[0], 1), out.shape
    assert jnp.allclose(out, ref, rtol=2e-2, atol=1e-3), (out, ref)

    print("KERNEL_OK")
</pallas_src>

<mosaic_0001>
module attributes {stable_mosaic.version = 11 : i64} {
  func.func @fused_scale_kernel(%arg0: i32, %arg1: memref<1x36x16xbf16, #tpu.memory_space<vmem>>, %arg2: memref<32x36xbf16, #tpu.memory_space<vmem>>, %arg3: memref<32x1xf32, #tpu.memory_space<vmem>>, %arg4: memref<32x1xf32, #tpu.memory_space<vmem>>, %arg5: memref<1xf32, #tpu.memory_space<smem>>, %arg6: memref<1x1x128xf32, #tpu.memory_space<vmem>>) attributes {dimension_semantics = [#tpu.dimension_semantics<parallel>], iteration_bounds = array<i64: 2>, scalar_prefetch = 0 : i64, scratch_operands = 0 : i64, tpu.core_type = #tpu.core_type<tc>, window_params = [{transform_indices = @transform_0, window_bounds = array<i64: 1, 36, 16>}, {pipeline_mode = #tpu.pipeline_mode<synchronous>, transform_indices = @transform_1, window_bounds = array<i64: 32, 36>}, {pipeline_mode = #tpu.pipeline_mode<synchronous>, transform_indices = @transform_2, window_bounds = array<i64: 32, 1>}, {pipeline_mode = #tpu.pipeline_mode<synchronous>, transform_indices = @transform_3, window_bounds = array<i64: 32, 1>}, {transform_indices = @transform_4, window_bounds = array<i64: 1>}, {transform_indices = @transform_5, window_bounds = array<i64: 1, 1, 128>}]} {
    %c0 = arith.constant 0 : index
    %c0_0 = arith.constant 0 : index
    %c0_1 = arith.constant 0 : index
    %0 = vector.load %arg1[%c0, %c0_0, %c0_1] : memref<1x36x16xbf16, #tpu.memory_space<vmem>>, vector<1x36x16xbf16>
    %1 = vector.shape_cast %0 : vector<1x36x16xbf16> to vector<36x16xbf16>
    %c0_2 = arith.constant 0 : index
    %c0_3 = arith.constant 0 : index
    %2 = vector.load %arg2[%c0_2, %c0_3] : memref<32x36xbf16, #tpu.memory_space<vmem>>, vector<32x36xbf16>
    %cst = arith.constant dense<0.000000e+00> : vector<32x16xf32>
    %3 = tpu.matmul %2, %1, %cst {dimension_numbers = #tpu.dot_dimension_numbers<[1], [0], [0], [1], [0, 0, 1, 1], [], []>} : vector<32x36xbf16>, vector<36x16xbf16>, vector<32x16xf32> -> vector<32x16xf32>
    %c0_4 = arith.constant 0 : index
    %c0_5 = arith.constant 0 : index
    %4 = vector.load %arg3[%c0_4, %c0_5] : memref<32x1xf32, #tpu.memory_space<vmem>>, vector<32x1xf32>
    %5 = vector.broadcast %4 : vector<32x1xf32> to vector<32x16xf32>
    %6 = arith.addf %3, %5 : vector<32x16xf32>
    %cst_6 = arith.constant 0.000000e+00 : f32
    %7 = vector.broadcast %cst_6 : f32 to vector<32x16xf32>
    %8 = arith.maximumf %6, %7 : vector<32x16xf32>
    %c0_7 = arith.constant 0 : index
    %c0_8 = arith.constant 0 : index
    %9 = vector.load %arg4[%c0_7, %c0_8] : memref<32x1xf32, #tpu.memory_space<vmem>>, vector<32x1xf32>
    %10 = vector.broadcast %9 : vector<32x1xf32> to vector<32x16xf32>
    %11 = arith.mulf %8, %10 : vector<32x16xf32>
    %cst_9 = arith.constant dense<0.000000e+00> : vector<16xf32>
    %12 = vector.multi_reduction <add>, %11, %cst_9 [0] : vector<32x16xf32> to vector<16xf32>
    %13 = vector.shape_cast %12 : vector<16xf32> to vector<1x16xf32>
    %c0_10 = arith.constant 0 : index
    %14 = memref.load %arg5[%c0_10] : memref<1xf32, #tpu.memory_space<smem>>
    %15 = vector.broadcast %14 : f32 to vector<1x16xf32>
    %16 = arith.addf %13, %15 : vector<1x16xf32>
    %17 = math.absf %16 : vector<1x16xf32>
    %cst_11 = arith.constant dense<0xFF800000> : vector<1xf32>
    %18 = vector.multi_reduction <maximumf>, %17, %cst_11 [1] : vector<1x16xf32> to vector<1xf32>
    %19 = vector.shape_cast %18 : vector<1xf32> to vector<1x1xf32>
    %20 = vector.shape_cast %19 : vector<1x1xf32> to vector<1x1x1xf32>
    %21 = vector.shape_cast %20 : vector<1x1x1xf32> to vector<1x1x1xf32>
    %22 = vector.broadcast %21 : vector<1x1x1xf32> to vector<1x1x128xf32>
    %c0_12 = arith.constant 0 : index
    %c0_13 = arith.constant 0 : index
    %c0_14 = arith.constant 0 : index
    %23 = vector.load %arg6[%c0_12, %c0_13, %c0_14] : memref<1x1x128xf32, #tpu.memory_space<vmem>>, vector<1x1x128xf32>
    tpu.vector_store %arg6[%c0_12, %c0_13, %c0_14], %22 {strides = array<i32>} : memref<1x1x128xf32, #tpu.memory_space<vmem>>, vector<1x1x128xf32>,
    return
  }
  func.func @transform_0(%arg0: i32) -> (i32, i32, i32) {
    %c0_i32 = arith.constant 0 : i32
    %c0_i32_0 = arith.constant 0 : i32
    %c0_i32_1 = arith.constant 0 : i32
    return %arg0, %c0_i32, %c0_i32_0 : i32, i32, i32
  }
  func.func @transform_1(%arg0: i32) -> (i32, i32) {
    %c0_i32 = arith.constant 0 : i32
    %c0_i32_0 = arith.constant 0 : i32
    %c0_i32_1 = arith.constant 0 : i32
    return %c0_i32, %c0_i32_0 : i32, i32
  }
  func.func @transform_2(%arg0: i32) -> (i32, i32) {
    %c0_i32 = arith.constant 0 : i32
    %c0_i32_0 = arith.constant 0 : i32
    %c0_i32_1 = arith.constant 0 : i32
    return %c0_i32, %c0_i32_0 : i32, i32
  }
  func.func @transform_3(%arg0: i32) -> (i32, i32) {
    %c0_i32 = arith.constant 0 : i32
    %c0_i32_0 = arith.constant 0 : i32
    %c0_i32_1 = arith.constant 0 : i32
    return %c0_i32, %c0_i32_0 : i32, i32
  }
  func.func @transform_4(%arg0: i32) -> i32 {
    %c0_i32 = arith.constant 0 : i32
    %c0_i32_0 = arith.constant 0 : i32
    return %c0_i32 : i32
  }
  func.func @transform_5(%arg0: i32) -> (i32, i32, i32) {
    %c0_i32 = arith.constant 0 : i32
    %c0_i32_0 = arith.constant 0 : i32
    %c0_i32_1 = arith.constant 0 : i32
    return %arg0, %c0_i32, %c0_i32_0 : i32, i32, i32
  }
}

module attributes {stable_mosaic.version = 11 : i64} {
  func.func @fused_scale_kernel(%arg0: i32, %arg1: memref<1x36x64xbf16, #tpu.memory_space<vmem>>, %arg2: memref<32x36xbf16, #tpu.memory_space<vmem>>, %arg3: memref<32x1xf32, #tpu.memory_space<vmem>>, %arg4: memref<32x1xf32, #tpu.memory_space<vmem>>, %arg5: memref<1xf32, #tpu.memory_space<smem>>, %arg6: memref<1x1x128xf32, #tpu.memory_space<vmem>>) attributes {dimension_semantics = [#tpu.dimension_semantics<parallel>], iteration_bounds = array<i64: 2>, scalar_prefetch = 0 : i64, scratch_operands = 0 : i64, tpu.core_type = #tpu.core_type<tc>, window_params = [{transform_indices = @transform_0, window_bounds = array<i64: 1, 36, 64>}, {pipeline_mode = #tpu.pipeline_mode<synchronous>, transform_indices = @transform_1, window_bounds = array<i64: 32, 36>}, {pipeline_mode = #tpu.pipeline_mode<synchronous>, transform_indices = @transform_2, window_bounds = array<i64: 32, 1>}, {pipeline_mode = #tpu.pipeline_mode<synchronous>, transform_indices = @transform_3, window_bounds = array<i64: 32, 1>}, {transform_indices = @transform_4, window_bounds = array<i64: 1>}, {transform_indices = @transform_5, window_bounds = array<i64: 1, 1, 128>}]} {
    %c0 = arith.constant 0 : index
    %c0_0 = arith.constant 0 : index
    %c0_1 = arith.constant 0 : index
    %0 = vector.load %arg1[%c0, %c0_0, %c0_1] : memref<1x36x64xbf16, #tpu.memory_space<vmem>>, vector<1x36x64xbf16>
    %1 = vector.shape_cast %0 : vector<1x36x64xbf16> to vector<36x64xbf16>
    %c0_2 = arith.constant 0 : index
    %c0_3 = arith.constant 0 : index
    %2 = vector.load %arg2[%c0_2, %c0_3] : memref<32x36xbf16, #tpu.memory_space<vmem>>, vector<32x36xbf16>
    %cst = arith.constant dense<0.000000e+00> : vector<32x64xf32>
    %3 = tpu.matmul %2, %1, %cst {dimension_numbers = #tpu.dot_dimension_numbers<[1], [0], [0], [1], [0, 0, 1, 1], [], []>} : vector<32x36xbf16>, vector<36x64xbf16>, vector<32x64xf32> -> vector<32x64xf32>
    %c0_4 = arith.constant 0 : index
    %c0_5 = arith.constant 0 : index
    %4 = vector.load %arg3[%c0_4, %c0_5] : memref<32x1xf32, #tpu.memory_space<vmem>>, vector<32x1xf32>
    %5 = vector.broadcast %4 : vector<32x1xf32> to vector<32x64xf32>
    %6 = arith.addf %3, %5 : vector<32x64xf32>
    %cst_6 = arith.constant 0.000000e+00 : f32
    %7 = vector.broadcast %cst_6 : f32 to vector<32x64xf32>
    %8 = arith.maximumf %6, %7 : vector<32x64xf32>
    %c0_7 = arith.constant 0 : index
    %c0_8 = arith.constant 0 : index
    %9 = vector.load %arg4[%c0_7, %c0_8] : memref<32x1xf32, #tpu.memory_space<vmem>>, vector<32x1xf32>
    %10 = vector.broadcast %9 : vector<32x1xf32> to vector<32x64xf32>
    %11 = arith.mulf %8, %10 : vector<32x64xf32>
    %cst_9 = arith.constant dense<0.000000e+00> : vector<64xf32>
    %12 = vector.multi_reduction <add>, %11, %cst_9 [0] : vector<32x64xf32> to vector<64xf32>
    %13 = vector.shape_cast %12 : vector<64xf32> to vector<1x64xf32>
    %c0_10 = arith.constant 0 : index
    %14 = memref.load %arg5[%c0_10] : memref<1xf32, #tpu.memory_space<smem>>
    %15 = vector.broadcast %14 : f32 to vector<1x64xf32>
    %16 = arith.addf %13, %15 : vector<1x64xf32>
    %17 = math.absf %16 : vector<1x64xf32>
    %18 = tpu.bitcast %17 : vector<1x64xf32> -> vector<1x64xi32>
    %c0_i32 = arith.constant 0 : i32
    %19 = vector.broadcast %c0_i32 : i32 to vector<1x1xi32>
    %c1073741824_i32 = arith.constant 1073741824 : i32
    %20 = vector.broadcast %c1073741824_i32 : i32 to vector<1x1xi32>
    %21 = arith.ori %19, %20 : vector<1x1xi32>
    %22 = vector.broadcast %21 : vector<1x1xi32> to vector<1x64xi32>
    %23 = arith.cmpi sge, %18, %22 : vector<1x64xi32>
    %24 = arith.extui %23 : vector<1x64xi1> to vector<1x64xi32>
    %cst_11 = arith.constant dense<0> : vector<1xi32>
    %25 = vector.multi_reduction <add>, %24, %cst_11 [1] : vector<1x64xi32> to vector<1xi32>
    %26 = vector.shape_cast %25 : vector<1xi32> to vector<1x1xi32>
    %c6_i32 = arith.constant 6 : i32
    %27 = vector.broadcast %c6_i32 : i32 to vector<1x1xi32>
    %28 = arith.cmpi sge, %26, %27 : vector<1x1xi32>
    %29 = arith.select %28, %21, %19 : vector<1x1xi1>, vector<1x1xi32>
    %c536870912_i32 = arith.constant 536870912 : i32
    %30 = vector.broadcast %c536870912_i32 : i32 to vector<1x1xi32>
    %31 = arith.ori %29, %30 : vector<1x1xi32>
    %32 = vector.broadcast %31 : vector<1x1xi32> to vector<1x64xi32>
    %33 = arith.cmpi sge, %18, %32 : vector<1x64xi32>
    %34 = arith.extui %33 : vector<1x64xi1> to vector<1x64xi32>
    %cst_12 = arith.constant dense<0> : vector<1xi32>
    %35 = vector.multi_reduction <add>, %34, %cst_12 [1] : vector<1x64xi32> to vector<1xi32>
    %36 = vector.shape_cast %35 : vector<1xi32> to vector<1x1xi32>
    %c6_i32_13 = arith.constant 6 : i32
    %37 = vector.broadcast %c6_i32_13 : i32 to vector<1x1xi32>
    %38 = arith.cmpi sge, %36, %37 : vector<1x1xi32>
    %39 = arith.select %38, %31, %29 : vector<1x1xi1>, vector<1x1xi32>
    %c268435456_i32 = arith.constant 268435456 : i32
    %40 = vector.broadcast %c268435456_i32 : i32 to vector<1x1xi32>
    %41 = arith.ori %39, %40 : vector<1x1xi32>
    %42 = vector.broadcast %41 : vector<1x1xi32> to vector<1x64xi32>
    %43 = arith.cmpi sge, %18, %42 : vector<1x64xi32>
    %44 = arith.extui %43 : vector<1x64xi1> to vector<1x64xi32>
    %cst_14 = arith.constant dense<0> : vector<1xi32>
    %45 = vector.multi_reduction <add>, %44, %cst_14 [1] : vector<1x64xi32> to vector<1xi32>
    %46 = vector.shape_cast %45 : vector<1xi32> to vector<1x1xi32>
    %c6_i32_15 = arith.constant 6 : i32
    %47 = vector.broadcast %c6_i32_15 : i32 to vector<1x1xi32>
    %48 = arith.cmpi sge, %46, %47 : vector<1x1xi32>
    %49 = arith.select %48, %41, %39 : vector<1x1xi1>, vector<1x1xi32>
    %c134217728_i32 = arith.constant 134217728 : i32
    %50 = vector.broadcast %c134217728_i32 : i32 to vector<1x1xi32>
    %51 = arith.ori %49, %50 : vector<1x1xi32>
    %52 = vector.broadcast %51 : vector<1x1xi32> to vector<1x64xi32>
    %53 = arith.cmpi sge, %18, %52 : vector<1x64xi32>
    %54 = arith.extui %53 : vector<1x64xi1> to vector<1x64xi32>
    %cst_16 = arith.constant dense<0> : vector<1xi32>
    %55 = vector.multi_reduction <add>, %54, %cst_16 [1] : vector<1x64xi32> to vector<1xi32>
    %56 = vector.shape_cast %55 : vector<1xi32> to vector<1x1xi32>
    %c6_i32_17 = arith.constant 6 : i32
    %57 = vector.broadcast %c6_i32_17 : i32 to vector<1x1xi32>
    %58 = arith.cmpi sge, %56, %57 : vector<1x1xi32>
    %59 = arith.select %58, %51, %49 : vector<1x1xi1>, vector<1x1xi32>
    %c67108864_i32 = arith.constant 67108864 : i32
    %60 = vector.broadcast %c67108864_i32 : i32 to vector<1x1xi32>
    %61 = arith.ori %59, %60 : vector<1x1xi32>
    %62 = vector.broadcast %61 : vector<1x1xi32> to vector<1x64xi32>
    %63 = arith.cmpi sge, %18, %62 : vector<1x64xi32>
    %64 = arith.extui %63 : vector<1x64xi1> to vector<1x64xi32>
    %cst_18 = arith.constant dense<0> : vector<1xi32>
    %65 = vector.multi_reduction <add>, %64, %cst_18 [1] : vector<1x64xi32> to vector<1xi32>
    %66 = vector.shape_cast %65 : vector<1xi32> to vector<1x1xi32>
    %c6_i32_19 = arith.constant 6 : i32
    %67 = vector.broadcast %c6_i32_19 : i32 to vector<1x1xi32>
    %68 = arith.cmpi sge, %66, %67 : vector<1x1xi32>
    %69 = arith.select %68, %61, %59 : vector<1x1xi1>, vector<1x1xi32>
    %c33554432_i32 = arith.constant 33554432 : i32
    %70 = vector.broadcast %c33554432_i32 : i32 to vector<1x1xi32>
    %71 = arith.ori %69, %70 : vector<1x1xi32>
    %72 = vector.broadcast %71 : vector<1x1xi32> to vector<1x64xi32>
    %73 = arith.cmpi sge, %18, %72 : vector<1x64xi32>
    %74 = arith.extui %73 : vector<1x64xi1> to vector<1x64xi32>
    %cst_20 = arith.constant dense<0> : vector<1xi32>
    %75 = vector.multi_reduction <add>, %74, %cst_20 [1] : vector<1x64xi32> to vector<1xi32>
    %76 = vector.shape_cast %75 : vector<1xi32> to vector<1x1xi32>
    %c6_i32_21 = arith.constant 6 : i32
    %77 = vector.broadcast %c6_i32_21 : i32 to vector<1x1xi32>
    %78 = arith.cmpi sge, %76, %77 : vector<1x1xi32>
    %79 = arith.select %78, %71, %69 : vector<1x1xi1>, vector<1x1xi32>
    %c16777216_i32 = arith.constant 16777216 : i32
    %80 = vector.broadcast %c16777216_i32 : i32 to vector<1x1xi32>
    %81 = arith.ori %79, %80 : vector<1x1xi32>
    %82 = vector.broadcast %81 : vector<1x1xi32> to vector<1x64xi32>
    %83 = arith.cmpi sge, %18, %82 : vector<1x64xi32>
    %84 = arith.extui %83 : vector<1x64xi1> to vector<1x64xi32>
    %cst_22 = arith.constant dense<0> : vector<1xi32>
    %85 = vector.multi_reduction <add>, %84, %cst_22 [1] : vector<1x64xi32> to vector<1xi32>
    %86 = vector.shape_cast %85 : vector<1xi32> to vector<1x1xi32>
    %c6_i32_23 = arith.constant 6 : i32
    %87 = vector.broadcast %c6_i32_23 : i32 to vector<1x1xi32>
    %88 = arith.cmpi sge, %86, %87 : vector<1x1xi32>
    %89 = arith.select %88, %81, %79 : vector<1x1xi1>, vector<1x1xi32>
    %c8388608_i32 = arith.constant 8388608 : i32
    %90 = vector.broadcast %c8388608_i32 : i32 to vector<1x1xi32>
    %91 = arith.ori %89, %90 : vector<1x1xi32>
    %92 = vector.broadcast %91 : vector<1x1xi32> to vector<1x64xi32>
    %93 = arith.cmpi sge, %18, %92 : vector<1x64xi32>
    %94 = arith.extui %93 : vector<1x64xi1> to vector<1x64xi32>
    %cst_24 = arith.constant dense<0> : vector<1xi32>
    %95 = vector.multi_reduction <add>, %94, %cst_24 [1] : vector<1x64xi32> to vector<1xi32>
    %96 = vector.shape_cast %95 : vector<1xi32> to vector<1x1xi32>
    %c6_i32_25 = arith.constant 6 : i32
    %97 = vector.broadcast %c6_i32_25 : i32 to vector<1x1xi32>
    %98 = arith.cmpi sge, %96, %97 : vector<1x1xi32>
    %99 = arith.select %98, %91, %89 : vector<1x1xi1>, vector<1x1xi32>
    %c4194304_i32 = arith.constant 4194304 : i32
    %100 = vector.broadcast %c4194304_i32 : i32 to vector<1x1xi32>
    %101 = arith.ori %99, %100 : vector<1x1xi32>
    %102 = vector.broadcast %101 : vector<1x1xi32> to vector<1x64xi32>
    %103 = arith.cmpi sge, %18, %102 : vector<1x64xi32>
    %104 = arith.extui %103 : vector<1x64xi1> to vector<1x64xi32>
    %cst_26 = arith.constant dense<0> : vector<1xi32>
    %105 = vector.multi_reduction <add>, %104, %cst_26 [1] : vector<1x64xi32> to vector<1xi32>
    %106 = vector.shape_cast %105 : vector<1xi32> to vector<1x1xi32>
    %c6_i32_27 = arith.constant 6 : i32
    %107 = vector.broadcast %c6_i32_27 : i32 to vector<1x1xi32>
    %108 = arith.cmpi sge, %106, %107 : vector<1x1xi32>
    %109 = arith.select %108, %101, %99 : vector<1x1xi1>, vector<1x1xi32>
    %c2097152_i32 = arith.constant 2097152 : i32
    %110 = vector.broadcast %c2097152_i32 : i32 to vector<1x1xi32>
    %111 = arith.ori %109, %110 : vector<1x1xi32>
    %112 = vector.broadcast %111 : vector<1x1xi32> to vector<1x64xi32>
    %113 = arith.cmpi sge, %18, %112 : vector<1x64xi32>
    %114 = arith.extui %113 : vector<1x64xi1> to vector<1x64xi32>
    %cst_28 = arith.constant dense<0> : vector<1xi32>
    %115 = vector.multi_reduction <add>, %114, %cst_28 [1] : vector<1x64xi32> to vector<1xi32>
    %116 = vector.shape_cast %115 : vector<1xi32> to vector<1x1xi32>
    %c6_i32_29 = arith.constant 6 : i32
    %117 = vector.broadcast %c6_i32_29 : i32 to vector<1x1xi32>
    %118 = arith.cmpi sge, %116, %117 : vector<1x1xi32>
    %119 = arith.select %118, %111, %109 : vector<1x1xi1>, vector<1x1xi32>
    %c1048576_i32 = arith.constant 1048576 : i32
    %120 = vector.broadcast %c1048576_i32 : i32 to vector<1x1xi32>
    %121 = arith.ori %119, %120 : vector<1x1xi32>
    %122 = vector.broadcast %121 : vector<1x1xi32> to vector<1x64xi32>
    %123 = arith.cmpi sge, %18, %122 : vector<1x64xi32>
    %124 = arith.extui %123 : vector<1x64xi1> to vector<1x64xi32>
    %cst_30 = arith.constant dense<0> : vector<1xi32>
    %125 = vector.multi_reduction <add>, %124, %cst_30 [1] : vector<1x64xi32> to vector<1xi32>
    %126 = vector.shape_cast %125 : vector<1xi32> to vector<1x1xi32>
    %c6_i32_31 = arith.constant 6 : i32
    %127 = vector.broadcast %c6_i32_31 : i32 to vector<1x1xi32>
    %128 = arith.cmpi sge, %126, %127 : vector<1x1xi32>
    %129 = arith.select %128, %121, %119 : vector<1x1xi1>, vector<1x1xi32>
    %c524288_i32 = arith.constant 524288 : i32
    %130 = vector.broadcast %c524288_i32 : i32 to vector<1x1xi32>
    %131 = arith.ori %129, %130 : vector<1x1xi32>
    %132 = vector.broadcast %131 : vector<1x1xi32> to vector<1x64xi32>
    %133 = arith.cmpi sge, %18, %132 : vector<1x64xi32>
    %134 = arith.extui %133 : vector<1x64xi1> to vector<1x64xi32>
    %cst_32 = arith.constant dense<0> : vector<1xi32>
    %135 = vector.multi_reduction <add>, %134, %cst_32 [1] : vector<1x64xi32> to vector<1xi32>
    %136 = vector.shape_cast %135 : vector<1xi32> to vector<1x1xi32>
    %c6_i32_33 = arith.constant 6 : i32
    %137 = vector.broadcast %c6_i32_33 : i32 to vector<1x1xi32>
    %138 = arith.cmpi sge, %136, %137 : vector<1x1xi32>
    %139 = arith.select %138, %131, %129 : vector<1x1xi1>, vector<1x1xi32>
    %c262144_i32 = arith.constant 262144 : i32
    %140 = vector.broadcast %c262144_i32 : i32 to vector<1x1xi32>
    %141 = arith.ori %139, %140 : vector<1x1xi32>
    %142 = vector.broadcast %141 : vector<1x1xi32> to vector<1x64xi32>
    %143 = arith.cmpi sge, %18, %142 : vector<1x64xi32>
    %144 = arith.extui %143 : vector<1x64xi1> to vector<1x64xi32>
    %cst_34 = arith.constant dense<0> : vector<1xi32>
    %145 = vector.multi_reduction <add>, %144, %cst_34 [1] : vector<1x64xi32> to vector<1xi32>
    %146 = vector.shape_cast %145 : vector<1xi32> to vector<1x1xi32>
    %c6_i32_35 = arith.constant 6 : i32
    %147 = vector.broadcast %c6_i32_35 : i32 to vector<1x1xi32>
    %148 = arith.cmpi sge, %146, %147 : vector<1x1xi32>
    %149 = arith.select %148, %141, %139 : vector<1x1xi1>, vector<1x1xi32>
    %c131072_i32 = arith.constant 131072 : i32
    %150 = vector.broadcast %c131072_i32 : i32 to vector<1x1xi32>
    %151 = arith.ori %149, %150 : vector<1x1xi32>
    %152 = vector.broadcast %151 : vector<1x1xi32> to vector<1x64xi32>
    %153 = arith.cmpi sge, %18, %152 : vector<1x64xi32>
    %154 = arith.extui %153 : vector<1x64xi1> to vector<1x64xi32>
    %cst_36 = arith.constant dense<0> : vector<1xi32>
    %155 = vector.multi_reduction <add>, %154, %cst_36 [1] : vector<1x64xi32> to vector<1xi32>
    %156 = vector.shape_cast %155 : vector<1xi32> to vector<1x1xi32>
    %c6_i32_37 = arith.constant 6 : i32
    %157 = vector.broadcast %c6_i32_37 : i32 to vector<1x1xi32>
    %158 = arith.cmpi sge, %156, %157 : vector<1x1xi32>
    %159 = arith.select %158, %151, %149 : vector<1x1xi1>, vector<1x1xi32>
    %c65536_i32 = arith.constant 65536 : i32
    %160 = vector.broadcast %c65536_i32 : i32 to vector<1x1xi32>
    %161 = arith.ori %159, %160 : vector<1x1xi32>
    %162 = vector.broadcast %161 : vector<1x1xi32> to vector<1x64xi32>
    %163 = arith.cmpi sge, %18, %162 : vector<1x64xi32>
    %164 = arith.extui %163 : vector<1x64xi1> to vector<1x64xi32>
    %cst_38 = arith.constant dense<0> : vector<1xi32>
    %165 = vector.multi_reduction <add>, %164, %cst_38 [1] : vector<1x64xi32> to vector<1xi32>
    %166 = vector.shape_cast %165 : vector<1xi32> to vector<1x1xi32>
    %c6_i32_39 = arith.constant 6 : i32
    %167 = vector.broadcast %c6_i32_39 : i32 to vector<1x1xi32>
    %168 = arith.cmpi sge, %166, %167 : vector<1x1xi32>
    %169 = arith.select %168, %161, %159 : vector<1x1xi1>, vector<1x1xi32>
    %c32768_i32 = arith.constant 32768 : i32
    %170 = vector.broadcast %c32768_i32 : i32 to vector<1x1xi32>
    %171 = arith.ori %169, %170 : vector<1x1xi32>
    %172 = vector.broadcast %171 : vector<1x1xi32> to vector<1x64xi32>
    %173 = arith.cmpi sge, %18, %172 : vector<1x64xi32>
    %174 = arith.extui %173 : vector<1x64xi1> to vector<1x64xi32>
    %cst_40 = arith.constant dense<0> : vector<1xi32>
    %175 = vector.multi_reduction <add>, %174, %cst_40 [1] : vector<1x64xi32> to vector<1xi32>
    %176 = vector.shape_cast %175 : vector<1xi32> to vector<1x1xi32>
    %c6_i32_41 = arith.constant 6 : i32
    %177 = vector.broadcast %c6_i32_41 : i32 to vector<1x1xi32>
    %178 = arith.cmpi sge, %176, %177 : vector<1x1xi32>
    %179 = arith.select %178, %171, %169 : vector<1x1xi1>, vector<1x1xi32>
    %c16384_i32 = arith.constant 16384 : i32
    %180 = vector.broadcast %c16384_i32 : i32 to vector<1x1xi32>
    %181 = arith.ori %179, %180 : vector<1x1xi32>
    %182 = vector.broadcast %181 : vector<1x1xi32> to vector<1x64xi32>
    %183 = arith.cmpi sge, %18, %182 : vector<1x64xi32>
    %184 = arith.extui %183 : vector<1x64xi1> to vector<1x64xi32>
    %cst_42 = arith.constant dense<0> : vector<1xi32>
    %185 = vector.multi_reduction <add>, %184, %cst_42 [1] : vector<1x64xi32> to vector<1xi32>
    %186 = vector.shape_cast %185 : vector<1xi32> to vector<1x1xi32>
    %c6_i32_43 = arith.constant 6 : i32
    %187 = vector.broadcast %c6_i32_43 : i32 to vector<1x1xi32>
    %188 = arith.cmpi sge, %186, %187 : vector<1x1xi32>
    %189 = arith.select %188, %181, %179 : vector<1x1xi1>, vector<1x1xi32>
    %c8192_i32 = arith.constant 8192 : i32
    %190 = vector.broadcast %c8192_i32 : i32 to vector<1x1xi32>
    %191 = arith.ori %189, %190 : vector<1x1xi32>
    %192 = vector.broadcast %191 : vector<1x1xi32> to vector<1x64xi32>
    %193 = arith.cmpi sge, %18, %192 : vector<1x64xi32>
    %194 = arith.extui %193 : vector<1x64xi1> to vector<1x64xi32>
    %cst_44 = arith.constant dense<0> : vector<1xi32>
    %195 = vector.multi_reduction <add>, %194, %cst_44 [1] : vector<1x64xi32> to vector<1xi32>
    %196 = vector.shape_cast %195 : vector<1xi32> to vector<1x1xi32>
    %c6_i32_45 = arith.constant 6 : i32
    %197 = vector.broadcast %c6_i32_45 : i32 to vector<1x1xi32>
    %198 = arith.cmpi sge, %196, %197 : vector<1x1xi32>
    %199 = arith.select %198, %191, %189 : vector<1x1xi1>, vector<1x1xi32>
    %c4096_i32 = arith.constant 4096 : i32
    %200 = vector.broadcast %c4096_i32 : i32 to vector<1x1xi32>
    %201 = arith.ori %199, %200 : vector<1x1xi32>
    %202 = vector.broadcast %201 : vector<1x1xi32> to vector<1x64xi32>
    %203 = arith.cmpi sge, %18, %202 : vector<1x64xi32>
    %204 = arith.extui %203 : vector<1x64xi1> to vector<1x64xi32>
    %cst_46 = arith.constant dense<0> : vector<1xi32>
    %205 = vector.multi_reduction <add>, %204, %cst_46 [1] : vector<1x64xi32> to vector<1xi32>
    %206 = vector.shape_cast %205 : vector<1xi32> to vector<1x1xi32>
    %c6_i32_47 = arith.constant 6 : i32
    %207 = vector.broadcast %c6_i32_47 : i32 to vector<1x1xi32>
    %208 = arith.cmpi sge, %206, %207 : vector<1x1xi32>
    %209 = arith.select %208, %201, %199 : vector<1x1xi1>, vector<1x1xi32>
    %c2048_i32 = arith.constant 2048 : i32
    %210 = vector.broadcast %c2048_i32 : i32 to vector<1x1xi32>
    %211 = arith.ori %209, %210 : vector<1x1xi32>
    %212 = vector.broadcast %211 : vector<1x1xi32> to vector<1x64xi32>
    %213 = arith.cmpi sge, %18, %212 : vector<1x64xi32>
    %214 = arith.extui %213 : vector<1x64xi1> to vector<1x64xi32>
    %cst_48 = arith.constant dense<0> : vector<1xi32>
    %215 = vector.multi_reduction <add>, %214, %cst_48 [1] : vector<1x64xi32> to vector<1xi32>
    %216 = vector.shape_cast %215 : vector<1xi32> to vector<1x1xi32>
    %c6_i32_49 = arith.constant 6 : i32
    %217 = vector.broadcast %c6_i32_49 : i32 to vector<1x1xi32>
    %218 = arith.cmpi sge, %216, %217 : vector<1x1xi32>
    %219 = arith.select %218, %211, %209 : vector<1x1xi1>, vector<1x1xi32>
    %c1024_i32 = arith.constant 1024 : i32
    %220 = vector.broadcast %c1024_i32 : i32 to vector<1x1xi32>
    %221 = arith.ori %219, %220 : vector<1x1xi32>
    %222 = vector.broadcast %221 : vector<1x1xi32> to vector<1x64xi32>
    %223 = arith.cmpi sge, %18, %222 : vector<1x64xi32>
    %224 = arith.extui %223 : vector<1x64xi1> to vector<1x64xi32>
    %cst_50 = arith.constant dense<0> : vector<1xi32>
    %225 = vector.multi_reduction <add>, %224, %cst_50 [1] : vector<1x64xi32> to vector<1xi32>
    %226 = vector.shape_cast %225 : vector<1xi32> to vector<1x1xi32>
    %c6_i32_51 = arith.constant 6 : i32
    %227 = vector.broadcast %c6_i32_51 : i32 to vector<1x1xi32>
    %228 = arith.cmpi sge, %226, %227 : vector<1x1xi32>
    %229 = arith.select %228, %221, %219 : vector<1x1xi1>, vector<1x1xi32>
    %c512_i32 = arith.constant 512 : i32
    %230 = vector.broadcast %c512_i32 : i32 to vector<1x1xi32>
    %231 = arith.ori %229, %230 : vector<1x1xi32>
    %232 = vector.broadcast %231 : vector<1x1xi32> to vector<1x64xi32>
    %233 = arith.cmpi sge, %18, %232 : vector<1x64xi32>
    %234 = arith.extui %233 : vector<1x64xi1> to vector<1x64xi32>
    %cst_52 = arith.constant dense<0> : vector<1xi32>
    %235 = vector.multi_reduction <add>, %234, %cst_52 [1] : vector<1x64xi32> to vector<1xi32>
    %236 = vector.shape_cast %235 : vector<1xi32> to vector<1x1xi32>
    %c6_i32_53 = arith.constant 6 : i32
    %237 = vector.broadcast %c6_i32_53 : i32 to vector<1x1xi32>
    %238 = arith.cmpi sge, %236, %237 : vector<1x1xi32>
    %239 = arith.select %238, %231, %229 : vector<1x1xi1>, vector<1x1xi32>
    %c256_i32 = arith.constant 256 : i32
    %240 = vector.broadcast %c256_i32 : i32 to vector<1x1xi32>
    %241 = arith.ori %239, %240 : vector<1x1xi32>
    %242 = vector.broadcast %241 : vector<1x1xi32> to vector<1x64xi32>
    %243 = arith.cmpi sge, %18, %242 : vector<1x64xi32>
    %244 = arith.extui %243 : vector<1x64xi1> to vector<1x64xi32>
    %cst_54 = arith.constant dense<0> : vector<1xi32>
    %245 = vector.multi_reduction <add>, %244, %cst_54 [1] : vector<1x64xi32> to vector<1xi32>
    %246 = vector.shape_cast %245 : vector<1xi32> to vector<1x1xi32>
    %c6_i32_55 = arith.constant 6 : i32
    %247 = vector.broadcast %c6_i32_55 : i32 to vector<1x1xi32>
    %248 = arith.cmpi sge, %246, %247 : vector<1x1xi32>
    %249 = arith.select %248, %241, %239 : vector<1x1xi1>, vector<1x1xi32>
    %c128_i32 = arith.constant 128 : i32
    %250 = vector.broadcast %c128_i32 : i32 to vector<1x1xi32>
    %251 = arith.ori %249, %250 : vector<1x1xi32>
    %252 = vector.broadcast %251 : vector<1x1xi32> to vector<1x64xi32>
    %253 = arith.cmpi sge, %18, %252 : vector<1x64xi32>
    %254 = arith.extui %253 : vector<1x64xi1> to vector<1x64xi32>
    %cst_56 = arith.constant dense<0> : vector<1xi32>
    %255 = vector.multi_reduction <add>, %254, %cst_56 [1] : vector<1x64xi32> to vector<1xi32>
    %256 = vector.shape_cast %255 : vector<1xi32> to vector<1x1xi32>
    %c6_i32_57 = arith.constant 6 : i32
    %257 = vector.broadcast %c6_i32_57 : i32 to vector<1x1xi32>
    %258 = arith.cmpi sge, %256, %257 : vector<1x1xi32>
    %259 = arith.select %258, %251, %249 : vector<1x1xi1>, vector<1x1xi32>
    %c64_i32 = arith.constant 64 : i32
    %260 = vector.broadcast %c64_i32 : i32 to vector<1x1xi32>
    %261 = arith.ori %259, %260 : vector<1x1xi32>
    %262 = vector.broadcast %261 : vector<1x1xi32> to vector<1x64xi32>
    %263 = arith.cmpi sge, %18, %262 : vector<1x64xi32>
    %264 = arith.extui %263 : vector<1x64xi1> to vector<1x64xi32>
    %cst_58 = arith.constant dense<0> : vector<1xi32>
    %265 = vector.multi_reduction <add>, %264, %cst_58 [1] : vector<1x64xi32> to vector<1xi32>
    %266 = vector.shape_cast %265 : vector<1xi32> to vector<1x1xi32>
    %c6_i32_59 = arith.constant 6 : i32
    %267 = vector.broadcast %c6_i32_59 : i32 to vector<1x1xi32>
    %268 = arith.cmpi sge, %266, %267 : vector<1x1xi32>
    %269 = arith.select %268, %261, %259 : vector<1x1xi1>, vector<1x1xi32>
    %c32_i32 = arith.constant 32 : i32
    %270 = vector.broadcast %c32_i32 : i32 to vector<1x1xi32>
    %271 = arith.ori %269, %270 : vector<1x1xi32>
    %272 = vector.broadcast %271 : vector<1x1xi32> to vector<1x64xi32>
    %273 = arith.cmpi sge, %18, %272 : vector<1x64xi32>
    %274 = arith.extui %273 : vector<1x64xi1> to vector<1x64xi32>
    %cst_60 = arith.constant dense<0> : vector<1xi32>
    %275 = vector.multi_reduction <add>, %274, %cst_60 [1] : vector<1x64xi32> to vector<1xi32>
    %276 = vector.shape_cast %275 : vector<1xi32> to vector<1x1xi32>
    %c6_i32_61 = arith.constant 6 : i32
    %277 = vector.broadcast %c6_i32_61 : i32 to vector<1x1xi32>
    %278 = arith.cmpi sge, %276, %277 : vector<1x1xi32>
    %279 = arith.select %278, %271, %269 : vector<1x1xi1>, vector<1x1xi32>
    %c16_i32 = arith.constant 16 : i32
    %280 = vector.broadcast %c16_i32 : i32 to vector<1x1xi32>
    %281 = arith.ori %279, %280 : vector<1x1xi32>
    %282 = vector.broadcast %281 : vector<1x1xi32> to vector<1x64xi32>
    %283 = arith.cmpi sge, %18, %282 : vector<1x64xi32>
    %284 = arith.extui %283 : vector<1x64xi1> to vector<1x64xi32>
    %cst_62 = arith.constant dense<0> : vector<1xi32>
    %285 = vector.multi_reduction <add>, %284, %cst_62 [1] : vector<1x64xi32> to vector<1xi32>
    %286 = vector.shape_cast %285 : vector<1xi32> to vector<1x1xi32>
    %c6_i32_63 = arith.constant 6 : i32
    %287 = vector.broadcast %c6_i32_63 : i32 to vector<1x1xi32>
    %288 = arith.cmpi sge, %286, %287 : vector<1x1xi32>
    %289 = arith.select %288, %281, %279 : vector<1x1xi1>, vector<1x1xi32>
    %c8_i32 = arith.constant 8 : i32
    %290 = vector.broadcast %c8_i32 : i32 to vector<1x1xi32>
    %291 = arith.ori %289, %290 : vector<1x1xi32>
    %292 = vector.broadcast %291 : vector<1x1xi32> to vector<1x64xi32>
    %293 = arith.cmpi sge, %18, %292 : vector<1x64xi32>
    %294 = arith.extui %293 : vector<1x64xi1> to vector<1x64xi32>
    %cst_64 = arith.constant dense<0> : vector<1xi32>
    %295 = vector.multi_reduction <add>, %294, %cst_64 [1] : vector<1x64xi32> to vector<1xi32>
    %296 = vector.shape_cast %295 : vector<1xi32> to vector<1x1xi32>
    %c6_i32_65 = arith.constant 6 : i32
    %297 = vector.broadcast %c6_i32_65 : i32 to vector<1x1xi32>
    %298 = arith.cmpi sge, %296, %297 : vector<1x1xi32>
    %299 = arith.select %298, %291, %289 : vector<1x1xi1>, vector<1x1xi32>
    %c4_i32 = arith.constant 4 : i32
    %300 = vector.broadcast %c4_i32 : i32 to vector<1x1xi32>
    %301 = arith.ori %299, %300 : vector<1x1xi32>
    %302 = vector.broadcast %301 : vector<1x1xi32> to vector<1x64xi32>
    %303 = arith.cmpi sge, %18, %302 : vector<1x64xi32>
    %304 = arith.extui %303 : vector<1x64xi1> to vector<1x64xi32>
    %cst_66 = arith.constant dense<0> : vector<1xi32>
    %305 = vector.multi_reduction <add>, %304, %cst_66 [1] : vector<1x64xi32> to vector<1xi32>
    %306 = vector.shape_cast %305 : vector<1xi32> to vector<1x1xi32>
    %c6_i32_67 = arith.constant 6 : i32
    %307 = vector.broadcast %c6_i32_67 : i32 to vector<1x1xi32>
    %308 = arith.cmpi sge, %306, %307 : vector<1x1xi32>
    %309 = arith.select %308, %301, %299 : vector<1x1xi1>, vector<1x1xi32>
    %c2_i32 = arith.constant 2 : i32
    %310 = vector.broadcast %c2_i32 : i32 to vector<1x1xi32>
    %311 = arith.ori %309, %310 : vector<1x1xi32>
    %312 = vector.broadcast %311 : vector<1x1xi32> to vector<1x64xi32>
    %313 = arith.cmpi sge, %18, %312 : vector<1x64xi32>
    %314 = arith.extui %313 : vector<1x64xi1> to vector<1x64xi32>
    %cst_68 = arith.constant dense<0> : vector<1xi32>
    %315 = vector.multi_reduction <add>, %314, %cst_68 [1] : vector<1x64xi32> to vector<1xi32>
    %316 = vector.shape_cast %315 : vector<1xi32> to vector<1x1xi32>
    %c6_i32_69 = arith.constant 6 : i32
    %317 = vector.broadcast %c6_i32_69 : i32 to vector<1x1xi32>
    %318 = arith.cmpi sge, %316, %317 : vector<1x1xi32>
    %319 = arith.select %318, %311, %309 : vector<1x1xi1>, vector<1x1xi32>
    %c1_i32 = arith.constant 1 : i32
    %320 = vector.broadcast %c1_i32 : i32 to vector<1x1xi32>
    %321 = arith.ori %319, %320 : vector<1x1xi32>
    %322 = vector.broadcast %321 : vector<1x1xi32> to vector<1x64xi32>
    %323 = arith.cmpi sge, %18, %322 : vector<1x64xi32>
    %324 = arith.extui %323 : vector<1x64xi1> to vector<1x64xi32>
    %cst_70 = arith.constant dense<0> : vector<1xi32>
    %325 = vector.multi_reduction <add>, %324, %cst_70 [1] : vector<1x64xi32> to vector<1xi32>
    %326 = vector.shape_cast %325 : vector<1xi32> to vector<1x1xi32>
    %c6_i32_71 = arith.constant 6 : i32
    %327 = vector.broadcast %c6_i32_71 : i32 to vector<1x1xi32>
    %328 = arith.cmpi sge, %326, %327 : vector<1x1xi32>
    %329 = arith.select %328, %321, %319 : vector<1x1xi1>, vector<1x1xi32>
    %330 = tpu.bitcast %329 : vector<1x1xi32> -> vector<1x1xf32>
    %331 = vector.broadcast %330 : vector<1x1xf32> to vector<1x64xf32>
    %332 = arith.cmpf ogt, %17, %331 : vector<1x64xf32>
    %333 = arith.extui %332 : vector<1x64xi1> to vector<1x64xi32>
    %334 = arith.sitofp %333 : vector<1x64xi32> to vector<1x64xf32>
    %cst_72 = arith.constant dense<0.000000e+00> : vector<1xf32>
    %335 = vector.multi_reduction <add>, %334, %cst_72 [1] : vector<1x64xf32> to vector<1xf32>
    %336 = vector.shape_cast %335 : vector<1xf32> to vector<1x1xf32>
    %cst_73 = arith.constant 0.000000e+00 : f32
    %337 = vector.broadcast %cst_73 : f32 to vector<1x64xf32>
    %338 = arith.select %332, %17, %337 : vector<1x64xi1>, vector<1x64xf32>
    %cst_74 = arith.constant dense<0.000000e+00> : vector<1xf32>
    %339 = vector.multi_reduction <add>, %338, %cst_74 [1] : vector<1x64xf32> to vector<1xf32>
    %340 = vector.shape_cast %339 : vector<1xf32> to vector<1x1xf32>
    %cst_75 = arith.constant 6.000000e+00 : f32
    %341 = vector.broadcast %cst_75 : f32 to vector<1x1xf32>
    %342 = arith.subf %341, %336 : vector<1x1xf32>
    %343 = arith.mulf %342, %330 : vector<1x1xf32>
    %344 = arith.addf %340, %343 : vector<1x1xf32>
    %cst_76 = arith.constant 0.166666672 : f32
    %345 = vector.broadcast %cst_76 : f32 to vector<1x1xf32>
    %346 = arith.mulf %344, %345 : vector<1x1xf32>
    %347 = vector.shape_cast %346 : vector<1x1xf32> to vector<1x1x1xf32>
    %348 = vector.shape_cast %347 : vector<1x1x1xf32> to vector<1x1x1xf32>
    %349 = vector.broadcast %348 : vector<1x1x1xf32> to vector<1x1x128xf32>
    %c0_77 = arith.constant 0 : index
    %c0_78 = arith.constant 0 : index
    %c0_79 = arith.constant 0 : index
    %350 = vector.load %arg6[%c0_77, %c0_78, %c0_79] : memref<1x1x128xf32, #tpu.memory_space<vmem>>, vector<1x1x128xf32>
    tpu.vector_store %arg6[%c0_77, %c0_78, %c0_79], %349 {strides = array<i32>} : memref<1x1x128xf32, #tpu.memory_space<vmem>>, vector<1x1x128xf32>,
    return
  }
  func.func @transform_0(%arg0: i32) -> (i32, i32, i32) {
    %c0_i32 = arith.constant 0 : i32
    %c0_i32_0 = arith.constant 0 : i32
    %c0_i32_1 = arith.constant 0 : i32
    return %arg0, %c0_i32, %c0_i32_0 : i32, i32, i32
  }
  func.func @transform_1(%arg0: i32) -> (i32, i32) {
    %c0_i32 = arith.constant 0 : i32
    %c0_i32_0 = arith.constant 0 : i32
    %c0_i32_1 = arith.constant 0 : i32
    return %c0_i32, %c0_i32_0 : i32, i32
  }
  func.func @transform_2(%arg0: i32) -> (i32, i32) {
    %c0_i32 = arith.constant 0 : i32
    %c0_i32_0 = arith.constant 0 : i32
    %c0_i32_1 = arith.constant 0 : i32
    return %c0_i32, %c0_i32_0 : i32, i32
  }
  func.func @transform_3(%arg0: i32) -> (i32, i32) {
    %c0_i32 = arith.constant 0 : i32
    %c0_i32_0 = arith.constant 0 : i32
    %c0_i32_1 = arith.constant 0 : i32
    return %c0_i32, %c0_i32_0 : i32, i32
  }
  func.func @transform_4(%arg0: i32) -> i32 {
    %c0_i32 = arith.constant 0 : i32
    %c0_i32_0 = arith.constant 0 : i32
    return %c0_i32 : i32
  }
  func.func @transform_5(%arg0: i32) -> (i32, i32, i32) {
    %c0_i32 = arith.constant 0 : i32
    %c0_i32_0 = arith.constant 0 : i32
    %c0_i32_1 = arith.constant 0 : i32
    return %arg0, %c0_i32, %c0_i32_0 : i32, i32, i32
  }
}

</mosaic_0001>

<llo_original>
// kernel: _lambda_.3
$region0: #{_lambda_.3}
  #allocation0 [shape = 'u32[]', space=smem, size = 0x4, offset = 0x4, fixed_abs, tag = 'smem constant byte address 0x4 - core index']
  #allocation1 [shape = 'u32[144,128]{1,0:T(1,128)}', space=vmem, size = 0x12000, scoped, tag = 'internal scratch']
  #allocation2 [shape = 'f32[1]{0:T(128)S(6)}', space=smem, size = 0x200, scoped, tag = 'scoped memory for _lambda_.3']
  %s0 = inlined_call_operand.vmem [shape: bf16[2,36,16], index: 0, kind: input, shape index: {}]
  %s1 = inlined_call_operand.vmem [shape: bf16[32,36], index: 1, kind: input, shape index: {}]
  %s2 = inlined_call_operand.vmem [shape: f32[32,1], index: 2, kind: input, shape index: {}]
  %s3 = inlined_call_operand.vmem [shape: f32[32,1], index: 3, kind: input, shape index: {}]
  %s4 = inlined_call_operand.<no memory space> [shape: f32[1], index: 4, kind: input, shape index: {}]
  %s5 = inlined_call_operand.vmem [shape: f32[2,1,128], index: 5, kind: output, shape index: {}]
  %s6 = sld [smem:[#allocation0]]
  $region53: #{_lambda_.3} parent=0
    _
  %s8 = ssub.s32 1, %s6
  %s9 = scalar_select 0, %s8, %s6
  %10 = sst [smem:[#allocation2]] %s4
  loop: start=0, step=1, limit=4
  $region2: #{_lambda_.3} parent=0 // loop_pre_header
    _
  $region3: #{_lambda_.3} parent=0 // loop_header
    %s12 = sphi 0, %s16
    %p13 = scmp.ge.s32.totalorder %s12, 4
    %s22 = sphi 0, %s24
    %s25 = sphi 0, %s22
    %s26 = sphi 0, %s25
    %s42 = sphi 0, %s26
    %s46 = sphi 0, %s46
    %s48 = sphi 0, %s46
    %s49 = sphi 0, %s48
    %s63 = sphi 0, %s49
    %s67 = sphi 0, %s67
    %s69 = sphi 0, %s67
    %s70 = sphi 0, %s69
    %s84 = sphi 0, %s70
    %s88 = sphi 0, %s88
    %s90 = sphi 0, %s88
    %s91 = sphi 0, %s90
    %s105 = sphi 0, %s91
    %s109 = sphi 0, %s109
    %s111 = sphi 0, %s109
    %s112 = sphi 0, %s111
    %s126 = sphi 0, %s112
    %s132 = sphi 0, %s134
    %s135 = sphi 0, %s132
    %s136 = sphi 0, %s135
    %s152 = sphi 0, %s136
  $region4: #{_lambda_.3} parent=0 // loop_header_branch
    %15 = sbr.rel (%p13) target = $region8
  $region5: #{_lambda_.3} parent=0 // loop_body
    %s17 = ssub.s32 %s12, 1
    %s18 = ssub.s32 %s12, 2
    %s19 = sadd.s32 %s12, 1
    %s20 = ssub.s32 %s12, %s19
    %p21 = scmp.eq.s32.totalorder %s20, 0
    %s23 = sadd.s32 %s22, 1
    %s24 = scalar_select %p21, %s22, %s23
    %p27 = pneg %p21
    %p28 = scmp.eq.s32.totalorder %s12, 1
    %p29 = por %p27, %p28
    %p30 = scmp.ne.s32.totalorder %s22, %s25
    %p31 = scmp.eq.s32.totalorder %s12, 0
    %p32 = por %p30, %p31
    %p33 = scmp.ne.s32.totalorder %s22, %s25
    %p34 = scmp.eq.s32.totalorder %s17, 1
    %p35 = por %p33, %p34
    %p36 = scmp.ne.s32.totalorder %s25, %s26
    %p37 = scmp.eq.s32.totalorder %s17, 0
    %p38 = por %p36, %p37
    %p39 = scmp.ne.s32.totalorder %s25, %s26
    %p40 = scmp.eq.s32.totalorder %s18, 1
    %p41 = por %p39, %p40
    %p43 = scmp.ne.s32.totalorder %s26, %s42
    %p44 = scmp.eq.s32.totalorder %s18, 0
    %p45 = por %p43, %p44
    %s47 = sadd.s32 %s46, 1
    %p50 = scmp.eq.s32.totalorder %s12, 1
    %p51 = scmp.ne.s32.totalorder %s46, %s48
    %p52 = scmp.eq.s32.totalorder %s12, 0
    %p53 = por %p51, %p52
    %p54 = scmp.ne.s32.totalorder %s46, %s48
    %p55 = scmp.eq.s32.totalorder %s17, 1
    %p56 = por %p54, %p55
    %p57 = scmp.ne.s32.totalorder %s48, %s49
    %p58 = scmp.eq.s32.totalorder %s17, 0
    %p59 = por %p57, %p58
    %p60 = scmp.ne.s32.totalorder %s48, %s49
    %p61 = scmp.eq.s32.totalorder %s18, 1
    %p62 = por %p60, %p61
    %p64 = scmp.ne.s32.totalorder %s49, %s63
    %p65 = scmp.eq.s32.totalorder %s18, 0
    %p66 = por %p64, %p65
    %s68 = sadd.s32 %s67, 1
    %p71 = scmp.eq.s32.totalorder %s12, 1
    %p72 = scmp.ne.s32.totalorder %s67, %s69
    %p73 = scmp.eq.s32.totalorder %s12, 0
    %p74 = por %p72, %p73
    %p75 = scmp.ne.s32.totalorder %s67, %s69
    %p76 = scmp.eq.s32.totalorder %s17, 1
    %p77 = por %p75, %p76
    %p78 = scmp.ne.s32.totalorder %s69, %s70
    %p79 = scmp.eq.s32.totalorder %s17, 0
    %p80 = por %p78, %p79
    %p81 = scmp.ne.s32.totalorder %s69, %s70
    %p82 = scmp.eq.s32.totalorder %s18, 1
    %p83 = por %p81, %p82
    %p85 = scmp.ne.s32.totalorder %s70, %s84
    %p86 = scmp.eq.s32.totalorder %s18, 0
    %p87 = por %p85, %p86
    %s89 = sadd.s32 %s88, 1
    %p92 = scmp.eq.s32.totalorder %s12, 1
    %p93 = scmp.ne.s32.totalorder %s88, %s90
    %p94 = scmp.eq.s32.totalorder %s12, 0
    %p95 = por %p93, %p94
    %p96 = scmp.ne.s32.totalorder %s88, %s90
    %p97 = scmp.eq.s32.totalorder %s17, 1
    %p98 = por %p96, %p97
    %p99 = scmp.ne.s32.totalorder %s90, %s91
    %p100 = scmp.eq.s32.totalorder %s17, 0
    %p101 = por %p99, %p100
    %p102 = scmp.ne.s32.totalorder %s90, %s91
    %p103 = scmp.eq.s32.totalorder %s18, 1
    %p104 = por %p102, %p103
    %p106 = scmp.ne.s32.totalorder %s91, %s105
    %p107 = scmp.eq.s32.totalorder %s18, 0
    %p108 = por %p106, %p107
    %s110 = sadd.s32 %s109, 1
    %p113 = scmp.eq.s32.totalorder %s12, 1
    %p114 = scmp.ne.s32.totalorder %s109, %s111
    %p115 = scmp.eq.s32.totalorder %s12, 0
    %p116 = por %p114, %p115
    %p117 = scmp.ne.s32.totalorder %s109, %s111
    %p118 = scmp.eq.s32.totalorder %s17, 1
    %p119 = por %p117, %p118
    %p120 = scmp.ne.s32.totalorder %s111, %s112
    %p121 = scmp.eq.s32.totalorder %s17, 0
    %p122 = por %p120, %p121
    %p123 = scmp.ne.s32.totalorder %s111, %s112
    %p124 = scmp.eq.s32.totalorder %s18, 1
    %p125 = por %p123, %p124
    %p127 = scmp.ne.s32.totalorder %s112, %s126
    %p128 = scmp.eq.s32.totalorder %s18, 0
    %p129 = por %p127, %p128
    %s130 = ssub.s32 %s12, %s19
    %p131 = scmp.eq.s32.totalorder %s130, 0
    %s133 = sadd.s32 %s132, 1
    %s134 = scalar_select %p131, %s132, %s133
    %p137 = pneg %p131
    %p138 = scmp.eq.s32.totalorder %s12, 1
    %p139 = por %p137, %p138
    %p140 = scmp.ne.s32.totalorder %s132, %s135
    %p141 = scmp.eq.s32.totalorder %s12, 0
    %p142 = por %p140, %p141
    %p143 = scmp.ne.s32.totalorder %s132, %s135
    %p144 = scmp.eq.s32.totalorder %s17, 1
    %p145 = por %p143, %p144
    %p146 = scmp.ne.s32.totalorder %s135, %s136
    %p147 = scmp.eq.s32.totalorder %s17, 0
    %p148 = por %p146, %p147
    %p149 = scmp.ne.s32.totalorder %s135, %s136
    %p150 = scmp.eq.s32.totalorder %s18, 1
    %p151 = por %p149, %p150
    %p153 = scmp.ne.s32.totalorder %s136, %s152
    %p154 = scmp.eq.s32.totalorder %s18, 0
    %p155 = por %p153, %p154
    %p156 = scmp.le.s32.totalorder 1, %s12
    %p157 = scmp.lt.s32.totalorder %s12, 3
    %p158 = pnand %p156, %p157
    %p159 = pneg %p158
    // Predicated region
    $region9: #{_lambda_.3} parent=5 // pred_check
      _
    $region10: #{_lambda_.3} parent=5 // pred_check_branch
      %161 = sbr.rel (%p158) target = $region12
    $region11: #{_lambda_.3} parent=5 // pred_region
      %s162 = ssub.s32 %s12, 1
      // Predicated region
      $region13: #{_lambda_.3} parent=11 // pred_check
        %p163 = pneg %p59
      $region14: #{_lambda_.3} parent=11 // pred_check_branch
        %165 = sbr.rel (%p163) target = $region16
      $region15: #{_lambda_.3} parent=11 // pred_region
        _
      $region16: #{_lambda_.3} parent=11 // pred_fallthru
        _
      // Predicated region
      $region17: #{_lambda_.3} parent=11 // pred_check
        %p166 = pneg %p80
      $region18: #{_lambda_.3} parent=11 // pred_check_branch
        %168 = sbr.rel (%p166) target = $region20
      $region19: #{_lambda_.3} parent=11 // pred_region
        _
      $region20: #{_lambda_.3} parent=11 // pred_fallthru
        _
      // Predicated region
      $region21: #{_lambda_.3} parent=11 // pred_check
        %p169 = pneg %p101
      $region22: #{_lambda_.3} parent=11 // pred_check_branch
        %171 = sbr.rel (%p169) target = $region24
      $region23: #{_lambda_.3} parent=11 // pred_region
        _
      $region24: #{_lambda_.3} parent=11 // pred_fallthru
        _
      // Predicated region
      $region25: #{_lambda_.3} parent=11 // pred_check
        %p172 = pneg %p122
      $region26: #{_lambda_.3} parent=11 // pred_check_branch
        %174 = sbr.rel (%p172) target = $region28
      $region27: #{_lambda_.3} parent=11 // pred_region
        _
      $region28: #{_lambda_.3} parent=11 // pred_fallthru
        _
    $region12: #{_lambda_.3} parent=5 // pred_fallthru
      _
    %p175 = scmp.lt.s32.totalorder %s12, 2
    // Predicated region
    $region29: #{_lambda_.3} parent=5 // pred_check
      %p176 = pneg %p175
    $region30: #{_lambda_.3} parent=5 // pred_check_branch
      %178 = sbr.rel (%p176) target = $region32
    $region31: #{_lambda_.3} parent=5 // pred_region
      // Predicated region
      $region33: #{_lambda_.3} parent=31 // pred_check
        %p179 = pneg %p32
      $region34: #{_lambda_.3} parent=31 // pred_check_branch
        %181 = sbr.rel (%p179) target = $region36
      $region35: #{_lambda_.3} parent=31 // pred_region
        %p182 = scmp.lt.s32.totalorder %s12, 1
        %s183 = scalar_select %p182, %s12, 1
        %s184 = smul.addr %s183, 5
        %s185 = smul.addr %s184, 4
        %s186 = scalar_lea.vmem %s0, %s185
      $region36: #{_lambda_.3} parent=31 // pred_fallthru
        _
    $region32: #{_lambda_.3} parent=5 // pred_fallthru
      _
    %p187 = scmp.le.s32.totalorder 1, %s12
    %p188 = scmp.lt.s32.totalorder %s12, 3
    %p189 = pnand %p187, %p188
    %p190 = pneg %p189
    // Predicated region
    $region37: #{_lambda_.3} parent=5 // pred_check
      _
    $region38: #{_lambda_.3} parent=5 // pred_check_branch
      %192 = sbr.rel (%p189) target = $region40
    $region39: #{_lambda_.3} parent=5 // pred_region
      %s193 = ssub.s32 %s12, 1
      %p194 = scmp.lt.s32.totalorder %s17, 1
      %s195 = scalar_select %p194, %s17, 1
      %s196 = smul.addr %s195, 5
      %s197 = smul.addr %s196, 4
      %s198 = scalar_lea.vmem %s0, %s197
      %p199 = pneg %p38
      %p200 = pneg %p35
      %p201 = pneg %p59
      %p202 = pneg %p56
      %p203 = pneg %p80
      %p204 = pneg %p77
      %p205 = pneg %p101
      %p206 = pneg %p98
      %p207 = pneg %p122
      %p208 = pneg %p119
      %p209 = pneg %p148
      %p210 = pneg %p145
      %p211 = scmp.lt.s32.totalorder %s17, 1
      %s212 = scalar_select %p211, %s17, 1
      %s213 = scalar_lea.vmem %s5, %s212
      %p214 = scmp.lt.s32.totalorder %s17, 1
      %s215 = scalar_select %p214, %s17, 1
      %s216 = smul.addr %s215, 5
      %s217 = smul.addr %s216, 4
      %s218 = scalar_lea.vmem %s0, %s217
      %p219 = scmp.lt.s32.totalorder %s17, 1
      %s220 = scalar_select %p219, %s17, 1
      %s221 = scalar_lea.vmem %s5, %s220
      %v223 = vld [vmem:[%s218] sm:$0xf]
      %v224 = vld [vmem:[%s218 + $0x4] sm:$0xf]
      %v225 = vld [vmem:[%s218 + $0x8] sm:$0xf]
      %v226 = vld [vmem:[%s218 + $0xc] sm:$0xf]
      %v227 = vld [vmem:[%s218 + $0x10] sm:$0x3]
      %v228 = vld [vmem:[%s1] sm:$0xf]
      %v229 = vld [vmem:[%s1 + $0x4] sm:$0xf]
      %v230 = vld [vmem:[%s1 + $0x8] sm:$0xf]
      %v231 = vld [vmem:[%s1 + $0xc] sm:$0xf]
      %v232 = vld [vmem:[%s2] sm:$0xff]
      %v233 = vld [vmem:[%s2 + $0x8] sm:$0xff]
      %v234 = vld [vmem:[%s2 + $0x10] sm:$0xff]
      %v235 = vld [vmem:[%s2 + $0x18] sm:$0xff]
      %237 = vset.pattern.permute.xlu0 0
      %238 = vperm.xlu0 %237, %v232
      %v239 = vpop.permute.xlu0 %238
      %242 = vset.pattern.permute.xlu0 0
      %243 = vperm.xlu0 %242, %v233
      %v244 = vpop.permute.xlu0 %243
      %247 = vset.pattern.permute.xlu0 0
      %248 = vperm.xlu0 %247, %v234
      %v249 = vpop.permute.xlu0 %248
      %252 = vset.pattern.permute.xlu0 0
      %253 = vperm.xlu0 %252, %v235
      %v254 = vpop.permute.xlu0 %253
      %v260 = vunpack.c.l.b16 %v228
      %v261 = vunpack.c.l.b16 %v229
      %v262 = vunpack.c.l.b16 %v230
      %v263 = vunpack.c.l.b16 %v231
      %v264 = vpack.c.b16 %v261, %v260
      %v265 = vpack.c.b16 %v263, %v262
      %v271 = vunpack.c.l.b16 %v223
      %v272 = vunpack.c.l.b16 %v224
      %v273 = vunpack.c.l.b16 %v225
      %v274 = vunpack.c.l.b16 %v226
      %v275 = vunpack.c.l.b16 %v227
      %v276 = vpack.c.b16 %v272, %v271
      %v277 = vpack.c.b16 %v274, %v273
      %v278 = vpack.c.b16 %v275, %v275
      %vm281 = vcmask 293888
      %v283 = vsel %vm281, %v264, 0
      %v286 = vsel %vm281, %v265, 0
      %vm288 = vcmask 1041408
      %v290 = vsel %vm288, %v278, 0
      %292 = vmatprep.subr.bf16.mxu0 0
      %293 = vmatpush1.bf16.msra.mxu0 %v276
      %294 = vmatprep.subr.bf16.mxu0 0
      %295 = vmatpush1.bf16.msra.mxu0 %v277
      %296 = vmatprep.subr.bf16.mxu0 0
      %297 = vmatpush1.bf16.msra.mxu0 %v290
      %298 = vmatprep.subr.bf16.mxu0 0
      %299 = vmatpush1.bf16.msra.mxu0 0
      %300 = vmatprep.subr.bf16.mxu0 0
      %301 = vmatpush1.bf16.msra.mxu0 0
      %302 = vmatprep.subr.bf16.mxu0 0
      %303 = vmatpush1.bf16.msra.mxu0 0
      %304 = vmatprep.subr.bf16.mxu0 0
      %305 = vmatpush1.bf16.msra.mxu0 0
      %306 = vmatprep.subr.bf16.mxu0 0
      %307 = vmatpush1.bf16.msra.mxu0 0
      %308 = vmatprep.subr.bf16.mxu0 0
      %309 = vmatpush1.bf16.msra.mxu0 0
      %310 = vmatprep.subr.bf16.mxu0 0
      %311 = vmatpush1.bf16.msra.mxu0 0
      %312 = vmatprep.subr.bf16.mxu0 0
      %313 = vmatpush1.bf16.msra.mxu0 0
      %314 = vmatprep.subr.bf16.mxu0 0
      %315 = vmatpush1.bf16.msra.mxu0 0
      %316 = vmatprep.subr.bf16.mxu0 0
      %317 = vmatpush1.bf16.msra.mxu0 0
      %318 = vmatprep.subr.bf16.mxu0 0
      %319 = vmatpush1.bf16.msra.mxu0 0
      %320 = vmatprep.subr.bf16.mxu0 0
      %321 = vmatpush1.bf16.msra.mxu0 0
      %322 = vmatprep.subr.bf16.mxu0 0
      %323 = vmatpush1.bf16.msra.mxu0 0
      %324 = vmatprep.mubr.bf16.mxu0 0
      %325 = vmatmul.mubr.bf16.gmra.mrb[0].mxu0 %v283
      %v326 = vpop.f32.mrb[0].mxu0
      %v327 = vadd.f32 %v239, %v326
      %v328 = vpop.f32.mrb[0].mxu0
      %v329 = vpop.f32.mrb[0].mxu0
      %v330 = vadd.f32 %v244, %v329
      %v331 = vpop.f32.mrb[0].mxu0
      %332 = vmatprep.mubr.bf16.mxu0 0
      %333 = vmatmul.mubr.bf16.gmra.mrb[0].mxu0 %v286
      %v334 = vpop.f32.mrb[0].mxu0
      %v335 = vadd.f32 %v249, %v334
      %v336 = vpop.f32.mrb[0].mxu0
      %v337 = vpop.f32.mrb[0].mxu0
      %v338 = vadd.f32 %v254, %v337
      %v339 = vpop.f32.mrb[0].mxu0
      %340 = vdwg.mxu0
      %v341 = vmax.f32 %v327, 0.0
      %v342 = vmax.f32 %v330, 0.0
      %v343 = vmax.f32 %v335, 0.0
      %v344 = vmax.f32 %v338, 0.0
      %v345 = vld [vmem:[%s3] sm:$0xff]
      %v346 = vld [vmem:[%s3 + $0x8] sm:$0xff]
      %v347 = vld [vmem:[%s3 + $0x10] sm:$0xff]
      %v348 = vld [vmem:[%s3 + $0x18] sm:$0xff]
      %350 = vset.pattern.permute.xlu0 0
      %351 = vperm.xlu0 %350, %v345
      %v352 = vpop.permute.xlu0 %351
      %355 = vset.pattern.permute.xlu0 0
      %356 = vperm.xlu0 %355, %v346
      %v357 = vpop.permute.xlu0 %356
      %360 = vset.pattern.permute.xlu0 0
      %361 = vperm.xlu0 %360, %v347
      %v362 = vpop.permute.xlu0 %361
      %365 = vset.pattern.permute.xlu0 0
      %366 = vperm.xlu0 %365, %v348
      %v367 = vpop.permute.xlu0 %366
      %v369 = vmul.f32 %v341, %v352
      %v370 = vmul.f32 %v342, %v357
      %v371 = vmul.f32 %v343, %v362
      %v372 = vmul.f32 %v344, %v367
      %vm373 = vcmask 130048
      %v374 = vsel %vm373, %v369, 0.0
      %v375 = vsel %vm373, %v370, 0.0
      %v376 = vadd.f32 %v374, %v375
      %v377 = vsel %vm373, %v371, 0.0
      %v378 = vadd.f32 %v376, %v377
      %v379 = vsel %vm373, %v372, 0.0
      %v380 = vadd.f32 %v378, %v379
      %v381 = vrot.slane %v380, 4
      %v382 = vadd.f32 %v380, %v381
      %v383 = vrot.slane %v382, 2
      %v384 = vadd.f32 %v382, %v383
      %v385 = vrot.slane %v384, 1
      %v386 = vadd.f32 %v384, %v385
      %s387 = sld [smem:[#allocation2]]
      %v388 = vstv %s387
      %v389 = vadd.f32 %v386, %v388
      %v390 = vand.u32 2147483647, %v389
      %v391 = vsel %vm373, %v390, -inf
      %392 = vmax.xlane.f32.xlu0 %v391
      %v393 = vpop.xlane.xlu0 %392
      %394 = vst [vmem:[%s221] sm:$0x1] %v393
      %p395 = scmp.lt.s32.totalorder %s17, 1
      %s396 = scalar_select %p395, %s17, 1
      %s397 = scalar_lea.vmem %s5, %s396
      // Predicated region
      $region41: #{_lambda_.3} parent=39 // pred_check
        %p398 = pneg %p145
      $region42: #{_lambda_.3} parent=39 // pred_check_branch
        %400 = sbr.rel (%p398) target = $region44
      $region43: #{_lambda_.3} parent=39 // pred_region
        _
      $region44: #{_lambda_.3} parent=39 // pred_fallthru
        _
    $region40: #{_lambda_.3} parent=5 // pred_fallthru
      _
    %p401 = scmp.le.s32.totalorder 2, %s12
    // Predicated region
    $region45: #{_lambda_.3} parent=5 // pred_check
      %p402 = pneg %p401
    $region46: #{_lambda_.3} parent=5 // pred_check_branch
      %404 = sbr.rel (%p402) target = $region48
    $region47: #{_lambda_.3} parent=5 // pred_region
      %s405 = ssub.s32 %s12, 2
      // Predicated region
      $region49: #{_lambda_.3} parent=47 // pred_check
        %p406 = pneg %p151
      $region50: #{_lambda_.3} parent=47 // pred_check_branch
        %408 = sbr.rel (%p406) target = $region52
      $region51: #{_lambda_.3} parent=47 // pred_region
        %p409 = scmp.lt.s32.totalorder %s18, 1
        %s410 = scalar_select %p409, %s18, 1
        %s411 = scalar_lea.vmem %s5, %s410
      $region52: #{_lambda_.3} parent=47 // pred_fallthru
        _
    $region48: #{_lambda_.3} parent=5 // pred_fallthru
      _
  $region6: #{_lambda_.3} parent=0 // loop_footer
    %s16 = sadd.s32 1, %s12
  $region7: #{_lambda_.3} parent=0 // loop_footer_branch
    %11 = sbr.rel target = $region3
  $region8: #{_lambda_.3} parent=0 // loop_exit
    _

// kernel: _lambda_.2
$region0: #{_lambda_.2}
  #allocation0 [shape = 'u32[]', space=smem, size = 0x4, offset = 0x4, fixed_abs, tag = 'smem constant byte address 0x4 - core index']
  #allocation1 [shape = 'u32[144,128]{1,0:T(1,128)}', space=vmem, size = 0x12000, scoped, tag = 'internal scratch']
  #allocation2 [shape = 'f32[1]{0:T(128)S(6)}', space=smem, size = 0x200, scoped, tag = 'scoped memory for _lambda_.2']
  %s0 = inlined_call_operand.vmem [shape: bf16[2,36,64], index: 0, kind: input, shape index: {}]
  %s1 = inlined_call_operand.vmem [shape: bf16[32,36], index: 1, kind: input, shape index: {}]
  %s2 = inlined_call_operand.vmem [shape: f32[32,1], index: 2, kind: input, shape index: {}]
  %s3 = inlined_call_operand.vmem [shape: f32[32,1], index: 3, kind: input, shape index: {}]
  %s4 = inlined_call_operand.<no memory space> [shape: f32[1], index: 4, kind: input, shape index: {}]
  %s5 = inlined_call_operand.vmem [shape: f32[2,1,128], index: 5, kind: output, shape index: {}]
  %s6 = sld [smem:[#allocation0]]
  $region53: #{_lambda_.2} parent=0
    _
  %s8 = ssub.s32 1, %s6
  %s9 = scalar_select 0, %s8, %s6
  %10 = sst [smem:[#allocation2]] %s4
  loop: start=0, step=1, limit=4
  $region2: #{_lambda_.2} parent=0 // loop_pre_header
    _
  $region3: #{_lambda_.2} parent=0 // loop_header
    %s12 = sphi 0, %s16
    %p13 = scmp.ge.s32.totalorder %s12, 4
    %s22 = sphi 0, %s24
    %s25 = sphi 0, %s22
    %s26 = sphi 0, %s25
    %s42 = sphi 0, %s26
    %s46 = sphi 0, %s46
    %s48 = sphi 0, %s46
    %s49 = sphi 0, %s48
    %s63 = sphi 0, %s49
    %s67 = sphi 0, %s67
    %s69 = sphi 0, %s67
    %s70 = sphi 0, %s69
    %s84 = sphi 0, %s70
    %s88 = sphi 0, %s88
    %s90 = sphi 0, %s88
    %s91 = sphi 0, %s90
    %s105 = sphi 0, %s91
    %s109 = sphi 0, %s109
    %s111 = sphi 0, %s109
    %s112 = sphi 0, %s111
    %s126 = sphi 0, %s112
    %s132 = sphi 0, %s134
    %s135 = sphi 0, %s132
    %s136 = sphi 0, %s135
    %s152 = sphi 0, %s136
  $region4: #{_lambda_.2} parent=0 // loop_header_branch
    %15 = sbr.rel (%p13) target = $region8
  $region5: #{_lambda_.2} parent=0 // loop_body
    %s17 = ssub.s32 %s12, 1
    %s18 = ssub.s32 %s12, 2
    %s19 = sadd.s32 %s12, 1
    %s20 = ssub.s32 %s12, %s19
    %p21 = scmp.eq.s32.totalorder %s20, 0
    %s23 = sadd.s32 %s22, 1
    %s24 = scalar_select %p21, %s22, %s23
    %p27 = pneg %p21
    %p28 = scmp.eq.s32.totalorder %s12, 1
    %p29 = por %p27, %p28
    %p30 = scmp.ne.s32.totalorder %s22, %s25
    %p31 = scmp.eq.s32.totalorder %s12, 0
    %p32 = por %p30, %p31
    %p33 = scmp.ne.s32.totalorder %s22, %s25
    %p34 = scmp.eq.s32.totalorder %s17, 1
    %p35 = por %p33, %p34
    %p36 = scmp.ne.s32.totalorder %s25, %s26
    %p37 = scmp.eq.s32.totalorder %s17, 0
    %p38 = por %p36, %p37
    %p39 = scmp.ne.s32.totalorder %s25, %s26
    %p40 = scmp.eq.s32.totalorder %s18, 1
    %p41 = por %p39, %p40
    %p43 = scmp.ne.s32.totalorder %s26, %s42
    %p44 = scmp.eq.s32.totalorder %s18, 0
    %p45 = por %p43, %p44
    %s47 = sadd.s32 %s46, 1
    %p50 = scmp.eq.s32.totalorder %s12, 1
    %p51 = scmp.ne.s32.totalorder %s46, %s48
    %p52 = scmp.eq.s32.totalorder %s12, 0
    %p53 = por %p51, %p52
    %p54 = scmp.ne.s32.totalorder %s46, %s48
    %p55 = scmp.eq.s32.totalorder %s17, 1
    %p56 = por %p54, %p55
    %p57 = scmp.ne.s32.totalorder %s48, %s49
    %p58 = scmp.eq.s32.totalorder %s17, 0
    %p59 = por %p57, %p58
    %p60 = scmp.ne.s32.totalorder %s48, %s49
    %p61 = scmp.eq.s32.totalorder %s18, 1
    %p62 = por %p60, %p61
    %p64 = scmp.ne.s32.totalorder %s49, %s63
    %p65 = scmp.eq.s32.totalorder %s18, 0
    %p66 = por %p64, %p65
    %s68 = sadd.s32 %s67, 1
    %p71 = scmp.eq.s32.totalorder %s12, 1
    %p72 = scmp.ne.s32.totalorder %s67, %s69
    %p73 = scmp.eq.s32.totalorder %s12, 0
    %p74 = por %p72, %p73
    %p75 = scmp.ne.s32.totalorder %s67, %s69
    %p76 = scmp.eq.s32.totalorder %s17, 1
    %p77 = por %p75, %p76
    %p78 = scmp.ne.s32.totalorder %s69, %s70
    %p79 = scmp.eq.s32.totalorder %s17, 0
    %p80 = por %p78, %p79
    %p81 = scmp.ne.s32.totalorder %s69, %s70
    %p82 = scmp.eq.s32.totalorder %s18, 1
    %p83 = por %p81, %p82
    %p85 = scmp.ne.s32.totalorder %s70, %s84
    %p86 = scmp.eq.s32.totalorder %s18, 0
    %p87 = por %p85, %p86
    %s89 = sadd.s32 %s88, 1
    %p92 = scmp.eq.s32.totalorder %s12, 1
    %p93 = scmp.ne.s32.totalorder %s88, %s90
    %p94 = scmp.eq.s32.totalorder %s12, 0
    %p95 = por %p93, %p94
    %p96 = scmp.ne.s32.totalorder %s88, %s90
    %p97 = scmp.eq.s32.totalorder %s17, 1
    %p98 = por %p96, %p97
    %p99 = scmp.ne.s32.totalorder %s90, %s91
    %p100 = scmp.eq.s32.totalorder %s17, 0
    %p101 = por %p99, %p100
    %p102 = scmp.ne.s32.totalorder %s90, %s91
    %p103 = scmp.eq.s32.totalorder %s18, 1
    %p104 = por %p102, %p103
    %p106 = scmp.ne.s32.totalorder %s91, %s105
    %p107 = scmp.eq.s32.totalorder %s18, 0
    %p108 = por %p106, %p107
    %s110 = sadd.s32 %s109, 1
    %p113 = scmp.eq.s32.totalorder %s12, 1
    %p114 = scmp.ne.s32.totalorder %s109, %s111
    %p115 = scmp.eq.s32.totalorder %s12, 0
    %p116 = por %p114, %p115
    %p117 = scmp.ne.s32.totalorder %s109, %s111
    %p118 = scmp.eq.s32.totalorder %s17, 1
    %p119 = por %p117, %p118
    %p120 = scmp.ne.s32.totalorder %s111, %s112
    %p121 = scmp.eq.s32.totalorder %s17, 0
    %p122 = por %p120, %p121
    %p123 = scmp.ne.s32.totalorder %s111, %s112
    %p124 = scmp.eq.s32.totalorder %s18, 1
    %p125 = por %p123, %p124
    %p127 = scmp.ne.s32.totalorder %s112, %s126
    %p128 = scmp.eq.s32.totalorder %s18, 0
    %p129 = por %p127, %p128
    %s130 = ssub.s32 %s12, %s19
    %p131 = scmp.eq.s32.totalorder %s130, 0
    %s133 = sadd.s32 %s132, 1
    %s134 = scalar_select %p131, %s132, %s133
    %p137 = pneg %p131
    %p138 = scmp.eq.s32.totalorder %s12, 1
    %p139 = por %p137, %p138
    %p140 = scmp.ne.s32.totalorder %s132, %s135
    %p141 = scmp.eq.s32.totalorder %s12, 0
    %p142 = por %p140, %p141
    %p143 = scmp.ne.s32.totalorder %s132, %s135
    %p144 = scmp.eq.s32.totalorder %s17, 1
    %p145 = por %p143, %p144
    %p146 = scmp.ne.s32.totalorder %s135, %s136
    %p147 = scmp.eq.s32.totalorder %s17, 0
    %p148 = por %p146, %p147
    %p149 = scmp.ne.s32.totalorder %s135, %s136
    %p150 = scmp.eq.s32.totalorder %s18, 1
    %p151 = por %p149, %p150
    %p153 = scmp.ne.s32.totalorder %s136, %s152
    %p154 = scmp.eq.s32.totalorder %s18, 0
    %p155 = por %p153, %p154
    %p156 = scmp.le.s32.totalorder 1, %s12
    %p157 = scmp.lt.s32.totalorder %s12, 3
    %p158 = pnand %p156, %p157
    %p159 = pneg %p158
    // Predicated region
    $region9: #{_lambda_.2} parent=5 // pred_check
      _
    $region10: #{_lambda_.2} parent=5 // pred_check_branch
      %161 = sbr.rel (%p158) target = $region12
    $region11: #{_lambda_.2} parent=5 // pred_region
      %s162 = ssub.s32 %s12, 1
      // Predicated region
      $region13: #{_lambda_.2} parent=11 // pred_check
        %p163 = pneg %p59
      $region14: #{_lambda_.2} parent=11 // pred_check_branch
        %165 = sbr.rel (%p163) target = $region16
      $region15: #{_lambda_.2} parent=11 // pred_region
        _
      $region16: #{_lambda_.2} parent=11 // pred_fallthru
        _
      // Predicated region
      $region17: #{_lambda_.2} parent=11 // pred_check
        %p166 = pneg %p80
      $region18: #{_lambda_.2} parent=11 // pred_check_branch
        %168 = sbr.rel (%p166) target = $region20
      $region19: #{_lambda_.2} parent=11 // pred_region
        _
      $region20: #{_lambda_.2} parent=11 // pred_fallthru
        _
      // Predicated region
      $region21: #{_lambda_.2} parent=11 // pred_check
        %p169 = pneg %p101
      $region22: #{_lambda_.2} parent=11 // pred_check_branch
        %171 = sbr.rel (%p169) target = $region24
      $region23: #{_lambda_.2} parent=11 // pred_region
        _
      $region24: #{_lambda_.2} parent=11 // pred_fallthru
        _
      // Predicated region
      $region25: #{_lambda_.2} parent=11 // pred_check
        %p172 = pneg %p122
      $region26: #{_lambda_.2} parent=11 // pred_check_branch
        %174 = sbr.rel (%p172) target = $region28
      $region27: #{_lambda_.2} parent=11 // pred_region
        _
      $region28: #{_lambda_.2} parent=11 // pred_fallthru
        _
    $region12: #{_lambda_.2} parent=5 // pred_fallthru
      _
    %p175 = scmp.lt.s32.totalorder %s12, 2
    // Predicated region
    $region29: #{_lambda_.2} parent=5 // pred_check
      %p176 = pneg %p175
    $region30: #{_lambda_.2} parent=5 // pred_check_branch
      %178 = sbr.rel (%p176) target = $region32
    $region31: #{_lambda_.2} parent=5 // pred_region
      // Predicated region
      $region33: #{_lambda_.2} parent=31 // pred_check
        %p179 = pneg %p32
      $region34: #{_lambda_.2} parent=31 // pred_check_branch
        %181 = sbr.rel (%p179) target = $region36
      $region35: #{_lambda_.2} parent=31 // pred_region
        %p182 = scmp.lt.s32.totalorder %s12, 1
        %s183 = scalar_select %p182, %s12, 1
        %s184 = smul.addr %s183, 5
        %s185 = smul.addr %s184, 4
        %s186 = scalar_lea.vmem %s0, %s185
      $region36: #{_lambda_.2} parent=31 // pred_fallthru
        _
    $region32: #{_lambda_.2} parent=5 // pred_fallthru
      _
    %p187 = scmp.le.s32.totalorder 1, %s12
    %p188 = scmp.lt.s32.totalorder %s12, 3
    %p189 = pnand %p187, %p188
    %p190 = pneg %p189
    // Predicated region
    $region37: #{_lambda_.2} parent=5 // pred_check
      _
    $region38: #{_lambda_.2} parent=5 // pred_check_branch
      %192 = sbr.rel (%p189) target = $region40
    $region39: #{_lambda_.2} parent=5 // pred_region
      %s193 = ssub.s32 %s12, 1
      %p194 = scmp.lt.s32.totalorder %s17, 1
      %s195 = scalar_select %p194, %s17, 1
      %s196 = smul.addr %s195, 5
      %s197 = smul.addr %s196, 4
      %s198 = scalar_lea.vmem %s0, %s197
      %p199 = pneg %p38
      %p200 = pneg %p35
      %p201 = pneg %p59
      %p202 = pneg %p56
      %p203 = pneg %p80
      %p204 = pneg %p77
      %p205 = pneg %p101
      %p206 = pneg %p98
      %p207 = pneg %p122
      %p208 = pneg %p119
      %p209 = pneg %p148
      %p210 = pneg %p145
      %p211 = scmp.lt.s32.totalorder %s17, 1
      %s212 = scalar_select %p211, %s17, 1
      %s213 = scalar_lea.vmem %s5, %s212
      %p214 = scmp.lt.s32.totalorder %s17, 1
      %s215 = scalar_select %p214, %s17, 1
      %s216 = smul.addr %s215, 5
      %s217 = smul.addr %s216, 4
      %s218 = scalar_lea.vmem %s0, %s217
      %p219 = scmp.lt.s32.totalorder %s17, 1
      %s220 = scalar_select %p219, %s17, 1
      %s221 = scalar_lea.vmem %s5, %s220
      %v223 = vld [vmem:[%s218] sm:$0xf]
      %v224 = vld [vmem:[%s218 + $0x4] sm:$0xf]
      %v225 = vld [vmem:[%s218 + $0x8] sm:$0xf]
      %v226 = vld [vmem:[%s218 + $0xc] sm:$0xf]
      %v227 = vld [vmem:[%s218 + $0x10] sm:$0x3]
      %v228 = vld [vmem:[%s1] sm:$0xf]
      %v229 = vld [vmem:[%s1 + $0x4] sm:$0xf]
      %v230 = vld [vmem:[%s1 + $0x8] sm:$0xf]
      %v231 = vld [vmem:[%s1 + $0xc] sm:$0xf]
      %v232 = vld [vmem:[%s2] sm:$0xff]
      %v233 = vld [vmem:[%s2 + $0x8] sm:$0xff]
      %v234 = vld [vmem:[%s2 + $0x10] sm:$0xff]
      %v235 = vld [vmem:[%s2 + $0x18] sm:$0xff]
      %237 = vset.pattern.permute.xlu0 0
      %238 = vperm.xlu0 %237, %v232
      %v239 = vpop.permute.xlu0 %238
      %242 = vset.pattern.permute.xlu0 0
      %243 = vperm.xlu0 %242, %v233
      %v244 = vpop.permute.xlu0 %243
      %247 = vset.pattern.permute.xlu0 0
      %248 = vperm.xlu0 %247, %v234
      %v249 = vpop.permute.xlu0 %248
      %252 = vset.pattern.permute.xlu0 0
      %253 = vperm.xlu0 %252, %v235
      %v254 = vpop.permute.xlu0 %253
      %v260 = vunpack.c.l.b16 %v228
      %v261 = vunpack.c.l.b16 %v229
      %v262 = vunpack.c.l.b16 %v230
      %v263 = vunpack.c.l.b16 %v231
      %v264 = vpack.c.b16 %v261, %v260
      %v265 = vpack.c.b16 %v263, %v262
      %v271 = vunpack.c.l.b16 %v223
      %v272 = vunpack.c.l.b16 %v224
      %v273 = vunpack.c.l.b16 %v225
      %v274 = vunpack.c.l.b16 %v226
      %v275 = vunpack.c.l.b16 %v227
      %v276 = vpack.c.b16 %v272, %v271
      %v277 = vpack.c.b16 %v274, %v273
      %v278 = vpack.c.b16 %v275, %v275
      %vm281 = vcmask 293888
      %v283 = vsel %vm281, %v264, 0
      %v286 = vsel %vm281, %v265, 0
      %vm288 = vcmask 1041408
      %v290 = vsel %vm288, %v278, 0
      %292 = vmatprep.subr.bf16.mxu0 0
      %293 = vmatpush1.bf16.msra.mxu0 %v276
      %294 = vmatprep.subr.bf16.mxu0 0
      %295 = vmatpush1.bf16.msra.mxu0 %v277
      %296 = vmatprep.subr.bf16.mxu0 0
      %297 = vmatpush1.bf16.msra.mxu0 %v290
      %298 = vmatprep.subr.bf16.mxu0 0
      %299 = vmatpush1.bf16.msra.mxu0 0
      %300 = vmatprep.subr.bf16.mxu0 0
      %301 = vmatpush1.bf16.msra.mxu0 0
      %302 = vmatprep.subr.bf16.mxu0 0
      %303 = vmatpush1.bf16.msra.mxu0 0
      %304 = vmatprep.subr.bf16.mxu0 0
      %305 = vmatpush1.bf16.msra.mxu0 0
      %306 = vmatprep.subr.bf16.mxu0 0
      %307 = vmatpush1.bf16.msra.mxu0 0
      %308 = vmatprep.subr.bf16.mxu0 0
      %309 = vmatpush1.bf16.msra.mxu0 0
      %310 = vmatprep.subr.bf16.mxu0 0
      %311 = vmatpush1.bf16.msra.mxu0 0
      %312 = vmatprep.subr.bf16.mxu0 0
      %313 = vmatpush1.bf16.msra.mxu0 0
      %314 = vmatprep.subr.bf16.mxu0 0
      %315 = vmatpush1.bf16.msra.mxu0 0
      %316 = vmatprep.subr.bf16.mxu0 0
      %317 = vmatpush1.bf16.msra.mxu0 0
      %318 = vmatprep.subr.bf16.mxu0 0
      %319 = vmatpush1.bf16.msra.mxu0 0
      %320 = vmatprep.subr.bf16.mxu0 0
      %321 = vmatpush1.bf16.msra.mxu0 0
      %322 = vmatprep.subr.bf16.mxu0 0
      %323 = vmatpush1.bf16.msra.mxu0 0
      %324 = vmatprep.mubr.bf16.mxu0 0
      %325 = vmatmul.mubr.bf16.gmra.mrb[0].mxu0 %v283
      %v326 = vpop.f32.mrb[0].mxu0
      %v327 = vadd.f32 %v239, %v326
      %v328 = vpop.f32.mrb[0].mxu0
      %v329 = vpop.f32.mrb[0].mxu0
      %v330 = vadd.f32 %v244, %v329
      %v331 = vpop.f32.mrb[0].mxu0
      %332 = vmatprep.mubr.bf16.mxu0 0
      %333 = vmatmul.mubr.bf16.gmra.mrb[0].mxu0 %v286
      %v334 = vpop.f32.mrb[0].mxu0
      %v335 = vadd.f32 %v249, %v334
      %v336 = vpop.f32.mrb[0].mxu0
      %v337 = vpop.f32.mrb[0].mxu0
      %v338 = vadd.f32 %v254, %v337
      %v339 = vpop.f32.mrb[0].mxu0
      %340 = vdwg.mxu0
      %v341 = vmax.f32 %v327, 0.0
      %v342 = vmax.f32 %v330, 0.0
      %v343 = vmax.f32 %v335, 0.0
      %v344 = vmax.f32 %v338, 0.0
      %v345 = vld [vmem:[%s3] sm:$0xff]
      %v346 = vld [vmem:[%s3 + $0x8] sm:$0xff]
      %v347 = vld [vmem:[%s3 + $0x10] sm:$0xff]
      %v348 = vld [vmem:[%s3 + $0x18] sm:$0xff]
      %350 = vset.pattern.permute.xlu0 0
      %351 = vperm.xlu0 %350, %v345
      %v352 = vpop.permute.xlu0 %351
      %355 = vset.pattern.permute.xlu0 0
      %356 = vperm.xlu0 %355, %v346
      %v357 = vpop.permute.xlu0 %356
      %360 = vset.pattern.permute.xlu0 0
      %361 = vperm.xlu0 %360, %v347
      %v362 = vpop.permute.xlu0 %361
      %365 = vset.pattern.permute.xlu0 0
      %366 = vperm.xlu0 %365, %v348
      %v367 = vpop.permute.xlu0 %366
      %v369 = vmul.f32 %v341, %v352
      %v370 = vmul.f32 %v342, %v357
      %v371 = vmul.f32 %v343, %v362
      %v372 = vmul.f32 %v344, %v367
      %vm373 = vcmask 523264
      %v374 = vsel %vm373, %v369, 0.0
      %v375 = vsel %vm373, %v370, 0.0
      %v376 = vadd.f32 %v374, %v375
      %v377 = vsel %vm373, %v371, 0.0
      %v378 = vadd.f32 %v376, %v377
      %v379 = vsel %vm373, %v372, 0.0
      %v380 = vadd.f32 %v378, %v379
      %v381 = vrot.slane %v380, 4
      %v382 = vadd.f32 %v380, %v381
      %v383 = vrot.slane %v382, 2
      %v384 = vadd.f32 %v382, %v383
      %v385 = vrot.slane %v384, 1
      %v386 = vadd.f32 %v384, %v385
      %s387 = sld [smem:[#allocation2]]
      %v388 = vstv %s387
      %v389 = vadd.f32 %v386, %v388
      %v390 = vand.u32 2147483647, %v389
      %vm392 = vcmp.ge.s32.totalorder %v390, 1073741824
      %v393 = vsel %vm392, 1, 0
      %v394 = vsel %vm373, %v393, 0
      %v395 = vand.u32 %v394, 65535
      %v396 = vshrl.u32 %v394, 16
      %v397 = vcvt.s32.f32 %v395
      %v398 = vcvt.s32.f32 %v396
      %399 = vadd.xlane.f32.xlu0 %v397
      %v400 = vpop.xlane.xlu0 %399
      %401 = vadd.xlane.f32.xlu0 %v398
      %v402 = vpop.xlane.xlu0 %401
      %v403 = vcvt.f32.s32 %v400
      %v404 = vcvt.f32.s32 %v402
      %v405 = vshll.u32 %v404, 16
      %v406 = vadd.s32 %v405, %v403
      %vm407 = vcmp.ge.s32.totalorder %v406, 6
      %v408 = vsel %vm407, 1073741824, 0
      %v409 = vor.u32 %v408, 536870912
      %vm410 = vcmp.ge.s32.totalorder %v390, %v409
      %v411 = vsel %vm410, 1, 0
      %v412 = vsel %vm373, %v411, 0
      %v413 = vand.u32 %v412, 65535
      %v414 = vshrl.u32 %v412, 16
      %v415 = vcvt.s32.f32 %v413
      %v416 = vcvt.s32.f32 %v414
      %417 = vadd.xlane.f32.xlu0 %v415
      %v418 = vpop.xlane.xlu0 %417
      %419 = vadd.xlane.f32.xlu0 %v416
      %v420 = vpop.xlane.xlu0 %419
      %v421 = vcvt.f32.s32 %v418
      %v422 = vcvt.f32.s32 %v420
      %v423 = vshll.u32 %v422, 16
      %v424 = vadd.s32 %v423, %v421
      %vm425 = vcmp.ge.s32.totalorder %v424, 6
      %v426 = vsel %vm425, %v409, %v408
      %v427 = vor.u32 %v426, 268435456
      %vm428 = vcmp.ge.s32.totalorder %v390, %v427
      %v429 = vsel %vm428, 1, 0
      %v430 = vsel %vm373, %v429, 0
      %v431 = vand.u32 %v430, 65535
      %v432 = vshrl.u32 %v430, 16
      %v433 = vcvt.s32.f32 %v431
      %v434 = vcvt.s32.f32 %v432
      %435 = vadd.xlane.f32.xlu0 %v433
      %v436 = vpop.xlane.xlu0 %435
      %437 = vadd.xlane.f32.xlu0 %v434
      %v438 = vpop.xlane.xlu0 %437
      %v439 = vcvt.f32.s32 %v436
      %v440 = vcvt.f32.s32 %v438
      %v441 = vshll.u32 %v440, 16
      %v442 = vadd.s32 %v441, %v439
      %vm443 = vcmp.ge.s32.totalorder %v442, 6
      %v444 = vsel %vm443, %v427, %v426
      %v445 = vor.u32 %v444, 134217728
      %vm446 = vcmp.ge.s32.totalorder %v390, %v445
      %v447 = vsel %vm446, 1, 0
      %v448 = vsel %vm373, %v447, 0
      %v449 = vand.u32 %v448, 65535
      %v450 = vshrl.u32 %v448, 16
      %v451 = vcvt.s32.f32 %v449
      %v452 = vcvt.s32.f32 %v450
      %453 = vadd.xlane.f32.xlu0 %v451
      %v454 = vpop.xlane.xlu0 %453
      %455 = vadd.xlane.f32.xlu0 %v452
      %v456 = vpop.xlane.xlu0 %455
      %v457 = vcvt.f32.s32 %v454
      %v458 = vcvt.f32.s32 %v456
      %v459 = vshll.u32 %v458, 16
      %v460 = vadd.s32 %v459, %v457
      %vm461 = vcmp.ge.s32.totalorder %v460, 6
      %v462 = vsel %vm461, %v445, %v444
      %v463 = vor.u32 %v462, 67108864
      %vm464 = vcmp.ge.s32.totalorder %v390, %v463
      %v465 = vsel %vm464, 1, 0
      %v466 = vsel %vm373, %v465, 0
      %v467 = vand.u32 %v466, 65535
      %v468 = vshrl.u32 %v466, 16
      %v469 = vcvt.s32.f32 %v467
      %v470 = vcvt.s32.f32 %v468
      %471 = vadd.xlane.f32.xlu0 %v469
      %v472 = vpop.xlane.xlu0 %471
      %473 = vadd.xlane.f32.xlu0 %v470
      %v474 = vpop.xlane.xlu0 %473
      %v475 = vcvt.f32.s32 %v472
      %v476 = vcvt.f32.s32 %v474
      %v477 = vshll.u32 %v476, 16
      %v478 = vadd.s32 %v477, %v475
      %vm479 = vcmp.ge.s32.totalorder %v478, 6
      %v480 = vsel %vm479, %v463, %v462
      %v481 = vor.u32 %v480, 33554432
      %vm482 = vcmp.ge.s32.totalorder %v390, %v481
      %v483 = vsel %vm482, 1, 0
      %v484 = vsel %vm373, %v483, 0
      %v485 = vand.u32 %v484, 65535
      %v486 = vshrl.u32 %v484, 16
      %v487 = vcvt.s32.f32 %v485
      %v488 = vcvt.s32.f32 %v486
      %489 = vadd.xlane.f32.xlu0 %v487
      %v490 = vpop.xlane.xlu0 %489
      %491 = vadd.xlane.f32.xlu0 %v488
      %v492 = vpop.xlane.xlu0 %491
      %v493 = vcvt.f32.s32 %v490
      %v494 = vcvt.f32.s32 %v492
      %v495 = vshll.u32 %v494, 16
      %v496 = vadd.s32 %v495, %v493
      %vm497 = vcmp.ge.s32.totalorder %v496, 6
      %v498 = vsel %vm497, %v481, %v480
      %v499 = vor.u32 %v498, 16777216
      %vm500 = vcmp.ge.s32.totalorder %v390, %v499
      %v501 = vsel %vm500, 1, 0
      %v502 = vsel %vm373, %v501, 0
      %v503 = vand.u32 %v502, 65535
      %v504 = vshrl.u32 %v502, 16
      %v505 = vcvt.s32.f32 %v503
      %v506 = vcvt.s32.f32 %v504
      %507 = vadd.xlane.f32.xlu0 %v505
      %v508 = vpop.xlane.xlu0 %507
      %509 = vadd.xlane.f32.xlu0 %v506
      %v510 = vpop.xlane.xlu0 %509
      %v511 = vcvt.f32.s32 %v508
      %v512 = vcvt.f32.s32 %v510
      %v513 = vshll.u32 %v512, 16
      %v514 = vadd.s32 %v513, %v511
      %vm515 = vcmp.ge.s32.totalorder %v514, 6
      %v516 = vsel %vm515, %v499, %v498
      %v517 = vor.u32 %v516, 8388608
      %vm518 = vcmp.ge.s32.totalorder %v390, %v517
      %v519 = vsel %vm518, 1, 0
      %v520 = vsel %vm373, %v519, 0
      %v521 = vand.u32 %v520, 65535
      %v522 = vshrl.u32 %v520, 16
      %v523 = vcvt.s32.f32 %v521
      %v524 = vcvt.s32.f32 %v522
      %525 = vadd.xlane.f32.xlu0 %v523
      %v526 = vpop.xlane.xlu0 %525
      %527 = vadd.xlane.f32.xlu0 %v524
      %v528 = vpop.xlane.xlu0 %527
      %v529 = vcvt.f32.s32 %v526
      %v530 = vcvt.f32.s32 %v528
      %v531 = vshll.u32 %v530, 16
      %v532 = vadd.s32 %v531, %v529
      %vm533 = vcmp.ge.s32.totalorder %v532, 6
      %v534 = vsel %vm533, %v517, %v516
      %v535 = vor.u32 %v534, 4194304
      %vm536 = vcmp.ge.s32.totalorder %v390, %v535
      %v537 = vsel %vm536, 1, 0
      %v538 = vsel %vm373, %v537, 0
      %v539 = vand.u32 %v538, 65535
      %v540 = vshrl.u32 %v538, 16
      %v541 = vcvt.s32.f32 %v539
      %v542 = vcvt.s32.f32 %v540
      %543 = vadd.xlane.f32.xlu0 %v541
      %v544 = vpop.xlane.xlu0 %543
      %545 = vadd.xlane.f32.xlu0 %v542
      %v546 = vpop.xlane.xlu0 %545
      %v547 = vcvt.f32.s32 %v544
      %v548 = vcvt.f32.s32 %v546
      %v549 = vshll.u32 %v548, 16
      %v550 = vadd.s32 %v549, %v547
      %vm551 = vcmp.ge.s32.totalorder %v550, 6
      %v552 = vsel %vm551, %v535, %v534
      %v553 = vor.u32 %v552, 2097152
      %vm554 = vcmp.ge.s32.totalorder %v390, %v553
      %v555 = vsel %vm554, 1, 0
      %v556 = vsel %vm373, %v555, 0
      %v557 = vand.u32 %v556, 65535
      %v558 = vshrl.u32 %v556, 16
      %v559 = vcvt.s32.f32 %v557
      %v560 = vcvt.s32.f32 %v558
      %561 = vadd.xlane.f32.xlu0 %v559
      %v562 = vpop.xlane.xlu0 %561
      %563 = vadd.xlane.f32.xlu0 %v560
      %v564 = vpop.xlane.xlu0 %563
      %v565 = vcvt.f32.s32 %v562
      %v566 = vcvt.f32.s32 %v564
      %v567 = vshll.u32 %v566, 16
      %v568 = vadd.s32 %v567, %v565
      %vm569 = vcmp.ge.s32.totalorder %v568, 6
      %v570 = vsel %vm569, %v553, %v552
      %v571 = vor.u32 %v570, 1048576
      %vm572 = vcmp.ge.s32.totalorder %v390, %v571
      %v573 = vsel %vm572, 1, 0
      %v574 = vsel %vm373, %v573, 0
      %v575 = vand.u32 %v574, 65535
      %v576 = vshrl.u32 %v574, 16
      %v577 = vcvt.s32.f32 %v575
      %v578 = vcvt.s32.f32 %v576
      %579 = vadd.xlane.f32.xlu0 %v577
      %v580 = vpop.xlane.xlu0 %579
      %581 = vadd.xlane.f32.xlu0 %v578
      %v582 = vpop.xlane.xlu0 %581
      %v583 = vcvt.f32.s32 %v580
      %v584 = vcvt.f32.s32 %v582
      %v585 = vshll.u32 %v584, 16
      %v586 = vadd.s32 %v585, %v583
      %vm587 = vcmp.ge.s32.totalorder %v586, 6
      %v588 = vsel %vm587, %v571, %v570
      %v589 = vor.u32 %v588, 524288
      %vm590 = vcmp.ge.s32.totalorder %v390, %v589
      %v591 = vsel %vm590, 1, 0
      %v592 = vsel %vm373, %v591, 0
      %v593 = vand.u32 %v592, 65535
      %v594 = vshrl.u32 %v592, 16
      %v595 = vcvt.s32.f32 %v593
      %v596 = vcvt.s32.f32 %v594
      %597 = vadd.xlane.f32.xlu0 %v595
      %v598 = vpop.xlane.xlu0 %597
      %599 = vadd.xlane.f32.xlu0 %v596
      %v600 = vpop.xlane.xlu0 %599
      %v601 = vcvt.f32.s32 %v598
      %v602 = vcvt.f32.s32 %v600
      %v603 = vshll.u32 %v602, 16
      %v604 = vadd.s32 %v603, %v601
      %vm605 = vcmp.ge.s32.totalorder %v604, 6
      %v606 = vsel %vm605, %v589, %v588
      %v607 = vor.u32 %v606, 262144
      %vm608 = vcmp.ge.s32.totalorder %v390, %v607
      %v609 = vsel %vm608, 1, 0
      %v610 = vsel %vm373, %v609, 0
      %v611 = vand.u32 %v610, 65535
      %v612 = vshrl.u32 %v610, 16
      %v613 = vcvt.s32.f32 %v611
      %v614 = vcvt.s32.f32 %v612
      %615 = vadd.xlane.f32.xlu0 %v613
      %v616 = vpop.xlane.xlu0 %615
      %617 = vadd.xlane.f32.xlu0 %v614
      %v618 = vpop.xlane.xlu0 %617
      %v619 = vcvt.f32.s32 %v616
      %v620 = vcvt.f32.s32 %v618
      %v621 = vshll.u32 %v620, 16
      %v622 = vadd.s32 %v621, %v619
      %vm623 = vcmp.ge.s32.totalorder %v622, 6
      %v624 = vsel %vm623, %v607, %v606
      %v625 = vor.u32 %v624, 131072
      %vm626 = vcmp.ge.s32.totalorder %v390, %v625
      %v627 = vsel %vm626, 1, 0
      %v628 = vsel %vm373, %v627, 0
      %v629 = vand.u32 %v628, 65535
      %v630 = vshrl.u32 %v628, 16
      %v631 = vcvt.s32.f32 %v629
      %v632 = vcvt.s32.f32 %v630
      %633 = vadd.xlane.f32.xlu0 %v631
      %v634 = vpop.xlane.xlu0 %633
      %635 = vadd.xlane.f32.xlu0 %v632
      %v636 = vpop.xlane.xlu0 %635
      %v637 = vcvt.f32.s32 %v634
      %v638 = vcvt.f32.s32 %v636
      %v639 = vshll.u32 %v638, 16
      %v640 = vadd.s32 %v639, %v637
      %vm641 = vcmp.ge.s32.totalorder %v640, 6
      %v642 = vsel %vm641, %v625, %v624
      %v643 = vor.u32 %v642, 65536
      %vm644 = vcmp.ge.s32.totalorder %v390, %v643
      %v645 = vsel %vm644, 1, 0
      %v646 = vsel %vm373, %v645, 0
      %v647 = vand.u32 %v646, 65535
      %v648 = vshrl.u32 %v646, 16
      %v649 = vcvt.s32.f32 %v647
      %v650 = vcvt.s32.f32 %v648
      %651 = vadd.xlane.f32.xlu0 %v649
      %v652 = vpop.xlane.xlu0 %651
      %653 = vadd.xlane.f32.xlu0 %v650
      %v654 = vpop.xlane.xlu0 %653
      %v655 = vcvt.f32.s32 %v652
      %v656 = vcvt.f32.s32 %v654
      %v657 = vshll.u32 %v656, 16
      %v658 = vadd.s32 %v657, %v655
      %vm659 = vcmp.ge.s32.totalorder %v658, 6
      %v660 = vsel %vm659, %v643, %v642
      %v661 = vor.u32 %v660, 32768
      %vm662 = vcmp.ge.s32.totalorder %v390, %v661
      %v663 = vsel %vm662, 1, 0
      %v664 = vsel %vm373, %v663, 0
      %v665 = vand.u32 %v664, 65535
      %v666 = vshrl.u32 %v664, 16
      %v667 = vcvt.s32.f32 %v665
      %v668 = vcvt.s32.f32 %v666
      %669 = vadd.xlane.f32.xlu0 %v667
      %v670 = vpop.xlane.xlu0 %669
      %671 = vadd.xlane.f32.xlu0 %v668
      %v672 = vpop.xlane.xlu0 %671
      %v673 = vcvt.f32.s32 %v670
      %v674 = vcvt.f32.s32 %v672
      %v675 = vshll.u32 %v674, 16
      %v676 = vadd.s32 %v675, %v673
      %vm677 = vcmp.ge.s32.totalorder %v676, 6
      %v678 = vsel %vm677, %v661, %v660
      %v679 = vor.u32 %v678, 16384
      %vm680 = vcmp.ge.s32.totalorder %v390, %v679
      %v681 = vsel %vm680, 1, 0
      %v682 = vsel %vm373, %v681, 0
      %v683 = vand.u32 %v682, 65535
      %v684 = vshrl.u32 %v682, 16
      %v685 = vcvt.s32.f32 %v683
      %v686 = vcvt.s32.f32 %v684
      %687 = vadd.xlane.f32.xlu0 %v685
      %v688 = vpop.xlane.xlu0 %687
      %689 = vadd.xlane.f32.xlu0 %v686
      %v690 = vpop.xlane.xlu0 %689
      %v691 = vcvt.f32.s32 %v688
      %v692 = vcvt.f32.s32 %v690
      %v693 = vshll.u32 %v692, 16
      %v694 = vadd.s32 %v693, %v691
      %vm695 = vcmp.ge.s32.totalorder %v694, 6
      %v696 = vsel %vm695, %v679, %v678
      %v697 = vor.u32 %v696, 8192
      %vm698 = vcmp.ge.s32.totalorder %v390, %v697
      %v699 = vsel %vm698, 1, 0
      %v700 = vsel %vm373, %v699, 0
      %v701 = vand.u32 %v700, 65535
      %v702 = vshrl.u32 %v700, 16
      %v703 = vcvt.s32.f32 %v701
      %v704 = vcvt.s32.f32 %v702
      %705 = vadd.xlane.f32.xlu0 %v703
      %v706 = vpop.xlane.xlu0 %705
      %707 = vadd.xlane.f32.xlu0 %v704
      %v708 = vpop.xlane.xlu0 %707
      %v709 = vcvt.f32.s32 %v706
      %v710 = vcvt.f32.s32 %v708
      %v711 = vshll.u32 %v710, 16
      %v712 = vadd.s32 %v711, %v709
      %vm713 = vcmp.ge.s32.totalorder %v712, 6
      %v714 = vsel %vm713, %v697, %v696
      %v715 = vor.u32 %v714, 4096
      %vm716 = vcmp.ge.s32.totalorder %v390, %v715
      %v717 = vsel %vm716, 1, 0
      %v718 = vsel %vm373, %v717, 0
      %v719 = vand.u32 %v718, 65535
      %v720 = vshrl.u32 %v718, 16
      %v721 = vcvt.s32.f32 %v719
      %v722 = vcvt.s32.f32 %v720
      %723 = vadd.xlane.f32.xlu0 %v721
      %v724 = vpop.xlane.xlu0 %723
      %725 = vadd.xlane.f32.xlu0 %v722
      %v726 = vpop.xlane.xlu0 %725
      %v727 = vcvt.f32.s32 %v724
      %v728 = vcvt.f32.s32 %v726
      %v729 = vshll.u32 %v728, 16
      %v730 = vadd.s32 %v729, %v727
      %vm731 = vcmp.ge.s32.totalorder %v730, 6
      %v732 = vsel %vm731, %v715, %v714
      %v733 = vor.u32 %v732, 2048
      %vm734 = vcmp.ge.s32.totalorder %v390, %v733
      %v735 = vsel %vm734, 1, 0
      %v736 = vsel %vm373, %v735, 0
      %v737 = vand.u32 %v736, 65535
      %v738 = vshrl.u32 %v736, 16
      %v739 = vcvt.s32.f32 %v737
      %v740 = vcvt.s32.f32 %v738
      %741 = vadd.xlane.f32.xlu0 %v739
      %v742 = vpop.xlane.xlu0 %741
      %743 = vadd.xlane.f32.xlu0 %v740
      %v744 = vpop.xlane.xlu0 %743
      %v745 = vcvt.f32.s32 %v742
      %v746 = vcvt.f32.s32 %v744
      %v747 = vshll.u32 %v746, 16
      %v748 = vadd.s32 %v747, %v745
      %vm749 = vcmp.ge.s32.totalorder %v748, 6
      %v750 = vsel %vm749, %v733, %v732
      %v751 = vor.u32 %v750, 1024
      %vm752 = vcmp.ge.s32.totalorder %v390, %v751
      %v753 = vsel %vm752, 1, 0
      %v754 = vsel %vm373, %v753, 0
      %v755 = vand.u32 %v754, 65535
      %v756 = vshrl.u32 %v754, 16
      %v757 = vcvt.s32.f32 %v755
      %v758 = vcvt.s32.f32 %v756
      %759 = vadd.xlane.f32.xlu0 %v757
      %v760 = vpop.xlane.xlu0 %759
      %761 = vadd.xlane.f32.xlu0 %v758
      %v762 = vpop.xlane.xlu0 %761
      %v763 = vcvt.f32.s32 %v760
      %v764 = vcvt.f32.s32 %v762
      %v765 = vshll.u32 %v764, 16
      %v766 = vadd.s32 %v765, %v763
      %vm767 = vcmp.ge.s32.totalorder %v766, 6
      %v768 = vsel %vm767, %v751, %v750
      %v769 = vor.u32 %v768, 512
      %vm770 = vcmp.ge.s32.totalorder %v390, %v769
      %v771 = vsel %vm770, 1, 0
      %v772 = vsel %vm373, %v771, 0
      %v773 = vand.u32 %v772, 65535
      %v774 = vshrl.u32 %v772, 16
      %v775 = vcvt.s32.f32 %v773
      %v776 = vcvt.s32.f32 %v774
      %777 = vadd.xlane.f32.xlu0 %v775
      %v778 = vpop.xlane.xlu0 %777
      %779 = vadd.xlane.f32.xlu0 %v776
      %v780 = vpop.xlane.xlu0 %779
      %v781 = vcvt.f32.s32 %v778
      %v782 = vcvt.f32.s32 %v780
      %v783 = vshll.u32 %v782, 16
      %v784 = vadd.s32 %v783, %v781
      %vm785 = vcmp.ge.s32.totalorder %v784, 6
      %v786 = vsel %vm785, %v769, %v768
      %v787 = vor.u32 %v786, 256
      %vm788 = vcmp.ge.s32.totalorder %v390, %v787
      %v789 = vsel %vm788, 1, 0
      %v790 = vsel %vm373, %v789, 0
      %v791 = vand.u32 %v790, 65535
      %v792 = vshrl.u32 %v790, 16
      %v793 = vcvt.s32.f32 %v791
      %v794 = vcvt.s32.f32 %v792
      %795 = vadd.xlane.f32.xlu0 %v793
      %v796 = vpop.xlane.xlu0 %795
      %797 = vadd.xlane.f32.xlu0 %v794
      %v798 = vpop.xlane.xlu0 %797
      %v799 = vcvt.f32.s32 %v796
      %v800 = vcvt.f32.s32 %v798
      %v801 = vshll.u32 %v800, 16
      %v802 = vadd.s32 %v801, %v799
      %vm803 = vcmp.ge.s32.totalorder %v802, 6
      %v804 = vsel %vm803, %v787, %v786
      %v805 = vor.u32 %v804, 128
      %vm806 = vcmp.ge.s32.totalorder %v390, %v805
      %v807 = vsel %vm806, 1, 0
      %v808 = vsel %vm373, %v807, 0
      %v809 = vand.u32 %v808, 65535
      %v810 = vshrl.u32 %v808, 16
      %v811 = vcvt.s32.f32 %v809
      %v812 = vcvt.s32.f32 %v810
      %813 = vadd.xlane.f32.xlu0 %v811
      %v814 = vpop.xlane.xlu0 %813
      %815 = vadd.xlane.f32.xlu0 %v812
      %v816 = vpop.xlane.xlu0 %815
      %v817 = vcvt.f32.s32 %v814
      %v818 = vcvt.f32.s32 %v816
      %v819 = vshll.u32 %v818, 16
      %v820 = vadd.s32 %v819, %v817
      %vm821 = vcmp.ge.s32.totalorder %v820, 6
      %v822 = vsel %vm821, %v805, %v804
      %v823 = vor.u32 %v822, 64
      %vm824 = vcmp.ge.s32.totalorder %v390, %v823
      %v825 = vsel %vm824, 1, 0
      %v826 = vsel %vm373, %v825, 0
      %v827 = vand.u32 %v826, 65535
      %v828 = vshrl.u32 %v826, 16
      %v829 = vcvt.s32.f32 %v827
      %v830 = vcvt.s32.f32 %v828
      %831 = vadd.xlane.f32.xlu0 %v829
      %v832 = vpop.xlane.xlu0 %831
      %833 = vadd.xlane.f32.xlu0 %v830
      %v834 = vpop.xlane.xlu0 %833
      %v835 = vcvt.f32.s32 %v832
      %v836 = vcvt.f32.s32 %v834
      %v837 = vshll.u32 %v836, 16
      %v838 = vadd.s32 %v837, %v835
      %vm839 = vcmp.ge.s32.totalorder %v838, 6
      %v840 = vsel %vm839, %v823, %v822
      %v841 = vor.u32 %v840, 32
      %vm842 = vcmp.ge.s32.totalorder %v390, %v841
      %v843 = vsel %vm842, 1, 0
      %v844 = vsel %vm373, %v843, 0
      %v845 = vand.u32 %v844, 65535
      %v846 = vshrl.u32 %v844, 16
      %v847 = vcvt.s32.f32 %v845
      %v848 = vcvt.s32.f32 %v846
      %849 = vadd.xlane.f32.xlu0 %v847
      %v850 = vpop.xlane.xlu0 %849
      %851 = vadd.xlane.f32.xlu0 %v848
      %v852 = vpop.xlane.xlu0 %851
      %v853 = vcvt.f32.s32 %v850
      %v854 = vcvt.f32.s32 %v852
      %v855 = vshll.u32 %v854, 16
      %v856 = vadd.s32 %v855, %v853
      %vm857 = vcmp.ge.s32.totalorder %v856, 6
      %v858 = vsel %vm857, %v841, %v840
      %v859 = vor.u32 %v858, 16
      %vm860 = vcmp.ge.s32.totalorder %v390, %v859
      %v861 = vsel %vm860, 1, 0
      %v862 = vsel %vm373, %v861, 0
      %v863 = vand.u32 %v862, 65535
      %v864 = vshrl.u32 %v862, 16
      %v865 = vcvt.s32.f32 %v863
      %v866 = vcvt.s32.f32 %v864
      %867 = vadd.xlane.f32.xlu0 %v865
      %v868 = vpop.xlane.xlu0 %867
      %869 = vadd.xlane.f32.xlu0 %v866
      %v870 = vpop.xlane.xlu0 %869
      %v871 = vcvt.f32.s32 %v868
      %v872 = vcvt.f32.s32 %v870
      %v873 = vshll.u32 %v872, 16
      %v874 = vadd.s32 %v873, %v871
      %vm875 = vcmp.ge.s32.totalorder %v874, 6
      %v876 = vsel %vm875, %v859, %v858
      %v877 = vor.u32 %v876, 8
      %vm878 = vcmp.ge.s32.totalorder %v390, %v877
      %v879 = vsel %vm878, 1, 0
      %v880 = vsel %vm373, %v879, 0
      %v881 = vand.u32 %v880, 65535
      %v882 = vshrl.u32 %v880, 16
      %v883 = vcvt.s32.f32 %v881
      %v884 = vcvt.s32.f32 %v882
      %885 = vadd.xlane.f32.xlu0 %v883
      %v886 = vpop.xlane.xlu0 %885
      %887 = vadd.xlane.f32.xlu0 %v884
      %v888 = vpop.xlane.xlu0 %887
      %v889 = vcvt.f32.s32 %v886
      %v890 = vcvt.f32.s32 %v888
      %v891 = vshll.u32 %v890, 16
      %v892 = vadd.s32 %v891, %v889
      %vm893 = vcmp.ge.s32.totalorder %v892, 6
      %v894 = vsel %vm893, %v877, %v876
      %v895 = vor.u32 %v894, 4
      %vm896 = vcmp.ge.s32.totalorder %v390, %v895
      %v897 = vsel %vm896, 1, 0
      %v898 = vsel %vm373, %v897, 0
      %v899 = vand.u32 %v898, 65535
      %v900 = vshrl.u32 %v898, 16
      %v901 = vcvt.s32.f32 %v899
      %v902 = vcvt.s32.f32 %v900
      %903 = vadd.xlane.f32.xlu0 %v901
      %v904 = vpop.xlane.xlu0 %903
      %905 = vadd.xlane.f32.xlu0 %v902
      %v906 = vpop.xlane.xlu0 %905
      %v907 = vcvt.f32.s32 %v904
      %v908 = vcvt.f32.s32 %v906
      %v909 = vshll.u32 %v908, 16
      %v910 = vadd.s32 %v909, %v907
      %vm911 = vcmp.ge.s32.totalorder %v910, 6
      %v912 = vsel %vm911, %v895, %v894
      %v913 = vor.u32 %v912, 2
      %vm914 = vcmp.ge.s32.totalorder %v390, %v913
      %v915 = vsel %vm914, 1, 0
      %v916 = vsel %vm373, %v915, 0
      %v917 = vand.u32 %v916, 65535
      %v918 = vshrl.u32 %v916, 16
      %v919 = vcvt.s32.f32 %v917
      %v920 = vcvt.s32.f32 %v918
      %921 = vadd.xlane.f32.xlu0 %v919
      %v922 = vpop.xlane.xlu0 %921
      %923 = vadd.xlane.f32.xlu0 %v920
      %v924 = vpop.xlane.xlu0 %923
      %v925 = vcvt.f32.s32 %v922
      %v926 = vcvt.f32.s32 %v924
      %v927 = vshll.u32 %v926, 16
      %v928 = vadd.s32 %v927, %v925
      %vm929 = vcmp.ge.s32.totalorder %v928, 6
      %v930 = vsel %vm929, %v913, %v912
      %v931 = vor.u32 %v930, 1
      %vm932 = vcmp.ge.s32.totalorder %v390, %v931
      %v933 = vsel %vm932, 1, 0
      %v934 = vsel %vm373, %v933, 0
      %v935 = vand.u32 %v934, 65535
      %v936 = vshrl.u32 %v934, 16
      %v937 = vcvt.s32.f32 %v935
      %v938 = vcvt.s32.f32 %v936
      %939 = vadd.xlane.f32.xlu0 %v937
      %v940 = vpop.xlane.xlu0 %939
      %941 = vadd.xlane.f32.xlu0 %v938
      %v942 = vpop.xlane.xlu0 %941
      %v943 = vcvt.f32.s32 %v940
      %v944 = vcvt.f32.s32 %v942
      %v945 = vshll.u32 %v944, 16
      %v946 = vadd.s32 %v945, %v943
      %vm947 = vcmp.ge.s32.totalorder %v946, 6
      %v948 = vsel %vm947, %v931, %v930
      %vm950 = vcmp.gt.f32.partialorder %v390, %v948
      %v951 = vsel %vm950, 1, 0
      %v952 = vcvt.s32.f32 %v951
      %v953 = vsel %vm373, %v952, 0.0
      %954 = vadd.xlane.f32.xlu0 %v953
      %v955 = vpop.xlane.xlu0 %954
      %v956 = vsel %vm950, %v390, 0.0
      %v957 = vsel %vm373, %v956, 0.0
      %958 = vadd.xlane.f32.xlu0 %v957
      %v959 = vpop.xlane.xlu0 %958
      %v960 = vsub.f32 6.0, %v955
      %v961 = vmul.f32 %v960, %v948
      %v962 = vadd.f32 %v959, %v961
      %v963 = vmul.f32 %v962, 0.16666667
      %964 = vst [vmem:[%s221] sm:$0x1] %v963
      %p965 = scmp.lt.s32.totalorder %s17, 1
      %s966 = scalar_select %p965, %s17, 1
      %s967 = scalar_lea.vmem %s5, %s966
      // Predicated region
      $region41: #{_lambda_.2} parent=39 // pred_check
        %p968 = pneg %p145
      $region42: #{_lambda_.2} parent=39 // pred_check_branch
        %970 = sbr.rel (%p968) target = $region44
      $region43: #{_lambda_.2} parent=39 // pred_region
        _
      $region44: #{_lambda_.2} parent=39 // pred_fallthru
        _
    $region40: #{_lambda_.2} parent=5 // pred_fallthru
      _
    %p971 = scmp.le.s32.totalorder 2, %s12
    // Predicated region
    $region45: #{_lambda_.2} parent=5 // pred_check
      %p972 = pneg %p971
    $region46: #{_lambda_.2} parent=5 // pred_check_branch
      %974 = sbr.rel (%p972) target = $region48
    $region47: #{_lambda_.2} parent=5 // pred_region
      %s975 = ssub.s32 %s12, 2
      // Predicated region
      $region49: #{_lambda_.2} parent=47 // pred_check
        %p976 = pneg %p151
      $region50: #{_lambda_.2} parent=47 // pred_check_branch
        %978 = sbr.rel (%p976) target = $region52
      $region51: #{_lambda_.2} parent=47 // pred_region
        %p979 = scmp.lt.s32.totalorder %s18, 1
        %s980 = scalar_select %p979, %s18, 1
        %s981 = scalar_lea.vmem %s5, %s980
      $region52: #{_lambda_.2} parent=47 // pred_fallthru
        _
    $region48: #{_lambda_.2} parent=5 // pred_fallthru
      _
  $region6: #{_lambda_.2} parent=0 // loop_footer
    %s16 = sadd.s32 1, %s12
  $region7: #{_lambda_.2} parent=0 // loop_footer_branch
    %11 = sbr.rel target = $region3
  $region8: #{_lambda_.2} parent=0 // loop_exit
    _

</llo_original>
